<compile_context>
chip_gen: v6e
topology: v6e:2x2x1
jax: 0.10.0
libtpu: 0.0.40
codegen_flags: <defaults>
</compile_context>

<pallas_src>
import functools

import jax
import jax.numpy as jnp
from jax.experimental import pallas as pl
from jax.experimental.pallas import tpu as pltpu


def _conv_bn_relu_kernel(x_ref, w_ref, gamma_ref, beta_ref, o_ref,
                         lhs_ref, sum_ref, sq_ref, *,
                         TH, Wo, Cin, Cout, KH, KW, inv_count, eps):
    """Grid = (phase, N, H-tiles).

    x_ref:     (1, H_pad, W_pad, Cin)   padded image, resident per batch elem
    w_ref:     (KH*KW*Cin, Cout)        packed conv weight
    gamma_ref: (1, Cout)                BN affine scale (f32)
    beta_ref:  (1, Cout)                BN affine shift (f32)
    o_ref:     (TH*Wo, Cout)            output row-tile (pixels-major)
    lhs_ref:   (TH*Wo, KH*KW*Cin)       im2col staging scratch (VMEM)
    sum_ref:   (1, Cout)                running per-channel sum (f32, VMEM)
    sq_ref:    (1, Cout)                running per-channel sum of squares
    """
    phase = pl.program_id(0)   # 0: accumulate BN stats, 1: normalize + store
    n = pl.program_id(1)       # batch element
    t = pl.program_id(2)       # output-row tile within the image

    # Zero the cross-tile statistics accumulators on the very first grid step.
    @pl.when((phase == 0) & (n == 0) & (t == 0))
    def _init_stats():
        sum_ref[...] = jnp.zeros_like(sum_ref)
        sq_ref[...] = jnp.zeros_like(sq_ref)

    # ---- Convolution for this (image, row-tile) ----------------------------
    # im2col the KH*KW taps into one VMEM scratch and run a single fat MXU
    # matmul (TH*Wo, KH*KW*Cin) x (KH*KW*Cin, Cout) instead of KH*KW tiny ones.
    row0 = pl.multiple_of(t * TH, TH)
    for kh in range(KH):
        for kw in range(KW):
            # (TH, Wo, Cin) shifted window of the padded input; the reshape
            # only merges leading dims (minor/lane dim untouched -> cheap).
            patch = x_ref[0, pl.ds(row0 + kh, TH), pl.ds(kw, Wo), :]
            j = kh * KW + kw
            lhs_ref[:, j * Cin:(j + 1) * Cin] = patch.reshape(TH * Wo, Cin)

    acc = jnp.dot(lhs_ref[...], w_ref[...],
                  preferred_element_type=jnp.float32)      # (TH*Wo, Cout) f32

    @pl.when(phase == 0)
    def _accumulate_stats():
        sum_ref[...] += jnp.sum(acc, axis=0, keepdims=True)
        sq_ref[...] += jnp.sum(acc * acc, axis=0, keepdims=True)

    @pl.when(phase == 1)
    def _normalize_and_store():
        mean = sum_ref[...] * inv_count                    # (1, Cout)
        var = sq_ref[...] * inv_count - mean * mean        # biased (train mode)
        scale = gamma_ref[...] * jax.lax.rsqrt(var + eps)
        shift = beta_ref[...] - mean * scale
        y = jnp.maximum(acc * scale + shift, 0.0)          # BN + ReLU
        o_ref[...] = y.astype(o_ref.dtype)


def _pick_row_tile(Ho, Wo):
    # Biggest 8-aligned row tile that divides Ho, keeps >=2 H-tiles when
    # possible (exercise the pipeline) and bounds the im2col scratch.  Bigger
    # tiles amortize the ~0.35us per-grid-step overhead.
    assert Ho % 8 == 0, "TODO(synk): only output heights that are multiples of 8"
    for th in (64, 32, 16, 8):
        if Ho % th == 0 and Ho // th >= 2 and th * Wo <= 4096:
            return th
    return 8


@functools.partial(jax.jit, static_argnames=("pad", "eps", "compute_dtype"))
def conv_bn_relu(x_nchw, w_oihw, gamma, beta, *, pad=1, eps=1e-5,
                 compute_dtype=jnp.bfloat16):
    """Fused Conv2d(stride=1, bias=False) + BatchNorm2d (training-mode batch
    statistics, i.e. what a fresh nn.BatchNorm2d computes in forward) + ReLU.

    compute_dtype: MXU operand dtype (bf16 recommended on v6e/v7x).
    Accumulation and all BatchNorm statistics are always float32.
    """
    N, Cin, H, W = x_nchw.shape
    Cout, Cin_w, KH, KW = w_oihw.shape
    assert Cin == Cin_w, (Cin, Cin_w)

    Ho = H + 2 * pad - KH + 1            # stride 1
    Wo = W + 2 * pad - KW + 1
    H_pad, W_pad = H + 2 * pad, W + 2 * pad

    # Layout glue in plain JAX (cheap, fuses under jit); hot path is in-kernel.
    x_nhwc = jnp.transpose(x_nchw, (0, 2, 3, 1))
    x_padded = jnp.pad(
        x_nhwc, ((0, 0), (pad, pad), (pad, pad), (0, 0))).astype(compute_dtype)
    w_packed = jnp.transpose(w_oihw, (2, 3, 1, 0)).reshape(
        KH * KW * Cin, Cout).astype(compute_dtype)          # (kh, kw, ci) major
    gamma2 = gamma.reshape(1, Cout).astype(jnp.float32)
    beta2 = beta.reshape(1, Cout).astype(jnp.float32)

    TH = _pick_row_tile(Ho, Wo)
    HT = Ho // TH
    grid = (2, N, HT)                    # (phase, batch, H row-tile)

    # Explicit VMEM budget: double-buffered input/output blocks + resident
    # weight/affine + scratch, with headroom; clamped so it is safe on v7x.
    isz_in = jnp.dtype(compute_dtype).itemsize
    isz_out = jnp.dtype(x_nchw.dtype).itemsize
    block_in = H_pad * W_pad * Cin * isz_in
    block_out = TH * Wo * Cout * isz_out
    block_w = KH * KW * Cin * Cout * isz_in
    scratch_b = TH * Wo * KH * KW * Cin * isz_in + 2 * Cout * 4
    vmem_limit = int(min(max(4 * (2 * block_in + 2 * block_out + block_w +
                                  scratch_b), 4 << 20), 32 << 20))

    kernel = functools.partial(
        _conv_bn_relu_kernel,
        TH=TH, Wo=Wo, Cin=Cin, Cout=Cout, KH=KH, KW=KW,
        inv_count=1.0 / float(N * Ho * Wo), eps=float(eps))

    out_flat = pl.pallas_call(
        kernel,
        out_shape=jax.ShapeDtypeStruct((N * Ho * Wo, Cout), x_nchw.dtype),
        grid_spec=pltpu.PrefetchScalarGridSpec(
            num_scalar_prefetch=0,
            grid=grid,
            in_specs=[
                # Padded image: resident across all H-tiles of batch elem n.
                pl.BlockSpec((1, H_pad, W_pad, Cin),
                             lambda p, n, t: (n, 0, 0, 0)),
                pl.BlockSpec((KH * KW * Cin, Cout), lambda p, n, t: (0, 0)),
                pl.BlockSpec((1, Cout), lambda p, n, t: (0, 0)),
                pl.BlockSpec((1, Cout), lambda p, n, t: (0, 0)),
            ],
            # Phase 0 parks on block 0 (never written); phase 1 walks the
            # blocks monotonically -> no out-of-order block revisits.
            out_specs=pl.BlockSpec((TH * Wo, Cout),
                                   lambda p, n, t: ((n * HT + t) * p, 0)),
            scratch_shapes=[
                pltpu.VMEM((TH * Wo, KH * KW * Cin), compute_dtype),  # im2col
                pltpu.VMEM((1, Cout), jnp.float32),                   # sum
                pltpu.VMEM((1, Cout), jnp.float32),                   # sum sq
            ],
        ),
        compiler_params=pltpu.CompilerParams(
            # All axes "arbitrary": the BN statistics scratch accumulates
            # across the whole grid, so the grid must run sequentially.
            dimension_semantics=("arbitrary", "arbitrary", "arbitrary"),
            vmem_limit_bytes=vmem_limit,
        ),
    )(x_padded, w_packed, gamma2, beta2)

    out = out_flat.reshape(N, Ho, Wo, Cout)
    return jnp.transpose(out, (0, 3, 1, 2))                 # back to NCHW


def _reference(x_nchw, w_oihw, gamma, beta, *, pad=1, eps=1e-5,
               compute_dtype=jnp.float32):
    conv = jax.lax.conv_general_dilated(
        x_nchw.astype(compute_dtype), w_oihw.astype(compute_dtype),
        window_strides=(1, 1), padding=((pad, pad), (pad, pad)),
        dimension_numbers=("NCHW", "OIHW", "NCHW"),
        preferred_element_type=jnp.float32)
    mean = conv.mean(axis=(0, 2, 3), keepdims=True)
    var = ((conv - mean) ** 2).mean(axis=(0, 2, 3), keepdims=True)  # biased
    y = (conv - mean) * jax.lax.rsqrt(var + eps)
    y = y * gamma[None, :, None, None] + beta[None, :, None, None]
    return jnp.maximum(y, 0.0)


if __name__ == "__main__":
    key = jax.random.PRNGKey(0)
    kx, kw = jax.random.split(key)

    # Small shapes consistent with the module: batch=2, in=4, out=8, 16x16.
    N, Cin, H, W = 2, 4, 16, 16
    Cout, K, pad = 8, 3, 1

    x = jax.random.normal(kx, (N, Cin, H, W), dtype=jnp.float32)
    fan_in = Cin * K * K
    w = jax.random.normal(kw, (Cout, Cin, K, K), dtype=jnp.float32) / jnp.sqrt(fan_in)
    # BatchNorm2d default init: weight=1, bias=0 (has_bias=False on the conv).
    gamma = jnp.ones((Cout,), dtype=jnp.float32)
    beta = jnp.zeros((Cout,), dtype=jnp.float32)

    out = jax.block_until_ready(conv_bn_relu(x, w, gamma, beta, pad=pad, eps=1e-5))
    assert out.shape == (N, Cout, H, W), out.shape

    # Tight check against a reference using the same bf16 MXU operand numerics.
    ref_bf16 = jax.block_until_ready(
        _reference(x, w, gamma, beta, pad=pad, eps=1e-5,
                   compute_dtype=jnp.bfloat16))
    assert jnp.allclose(out, ref_bf16, atol=1e-3, rtol=1e-3), \
        float(jnp.max(jnp.abs(out - ref_bf16)))

    # Looser check against the exact f32 module semantics (bf16 input rounding).
    ref_f32 = jax.block_until_ready(
        _reference(x, w, gamma, beta, pad=pad, eps=1e-5,
                   compute_dtype=jnp.float32))
    assert jnp.allclose(out, ref_f32, atol=5e-2, rtol=5e-2), \
        float(jnp.max(jnp.abs(out - ref_f32)))

    print("KERNEL_OK")
</pallas_src>

<mosaic_0001>
module attributes {stable_mosaic.version = 11 : i64} {
  func.func @_conv_bn_relu_kernel(%arg0: i32, %arg1: i32, %arg2: i32, %arg3: memref<1x18x18x4xbf16, #tpu.memory_space<vmem>>, %arg4: memref<36x8xbf16, #tpu.memory_space<vmem>>, %arg5: memref<1x8xf32, #tpu.memory_space<vmem>>, %arg6: memref<1x8xf32, #tpu.memory_space<vmem>>, %arg7: memref<128x8xf32, #tpu.memory_space<vmem>>, %arg8: memref<128x36xbf16, #tpu.memory_space<vmem>>, %arg9: memref<1x8xf32, #tpu.memory_space<vmem>>, %arg10: memref<1x8xf32, #tpu.memory_space<vmem>>) attributes {dimension_semantics = [#tpu.dimension_semantics<arbitrary>, #tpu.dimension_semantics<arbitrary>, #tpu.dimension_semantics<arbitrary>], iteration_bounds = array<i64: 2, 2, 2>, scalar_prefetch = 0 : i64, scratch_operands = 3 : i64, tpu.core_type = #tpu.core_type<tc>, window_params = [{transform_indices = @transform_0, window_bounds = array<i64: 1, 18, 18, 4>}, {pipeline_mode = #tpu.pipeline_mode<synchronous>, transform_indices = @transform_1, window_bounds = array<i64: 36, 8>}, {pipeline_mode = #tpu.pipeline_mode<synchronous>, transform_indices = @transform_2, window_bounds = array<i64: 1, 8>}, {pipeline_mode = #tpu.pipeline_mode<synchronous>, transform_indices = @transform_3, window_bounds = array<i64: 1, 8>}, {transform_indices = @transform_4, window_bounds = array<i64: 128, 8>}]} {
    %c0_i32 = arith.constant 0 : i32
    %0 = arith.cmpi eq, %arg0, %c0_i32 : i32
    %c0_i32_0 = arith.constant 0 : i32
    %1 = arith.cmpi eq, %arg1, %c0_i32_0 : i32
    %2 = arith.andi %0, %1 : i1
    %c0_i32_1 = arith.constant 0 : i32
    %3 = arith.cmpi eq, %arg2, %c0_i32_1 : i32
    %4 = arith.andi %2, %3 : i1
    %5 = arith.extui %4 : i1 to i32
    %c0_i32_2 = arith.constant 0 : i32
    %6 = arith.cmpi ne, %5, %c0_i32_2 : i32
    scf.if %6 {
      %cst_52 = arith.constant 0.000000e+00 : f32
      %72 = vector.broadcast %cst_52 : f32 to vector<1x8xf32>
      %c0_53 = arith.constant 0 : index
      %c0_54 = arith.constant 0 : index
      %73 = vector.load %arg9[%c0_53, %c0_54] : memref<1x8xf32, #tpu.memory_space<vmem>>, vector<1x8xf32>
      tpu.vector_store %arg9[%c0_53, %c0_54], %72 {strides = array<i32>} : memref<1x8xf32, #tpu.memory_space<vmem>>, vector<1x8xf32>,
      %cst_55 = arith.constant 0.000000e+00 : f32
      %74 = vector.broadcast %cst_55 : f32 to vector<1x8xf32>
      %c0_56 = arith.constant 0 : index
      %c0_57 = arith.constant 0 : index
      %75 = vector.load %arg10[%c0_56, %c0_57] : memref<1x8xf32, #tpu.memory_space<vmem>>, vector<1x8xf32>
      tpu.vector_store %arg10[%c0_56, %c0_57], %74 {strides = array<i32>} : memref<1x8xf32, #tpu.memory_space<vmem>>, vector<1x8xf32>,
    } else {
    }
    %c8_i32 = arith.constant 8 : i32
    %7 = arith.muli %arg2, %c8_i32 : i32
    %8 = tpu.assume_multiple %7, 8 : i32
    %c0_i32_3 = arith.constant 0 : i32
    %9 = arith.addi %8, %c0_i32_3 : i32
    %c0 = arith.constant 0 : index
    %10 = arith.index_cast %9 : i32 to index
    %c0_4 = arith.constant 0 : index
    %c0_5 = arith.constant 0 : index
    %11 = vector.load %arg3[%c0, %10, %c0_4, %c0_5] : memref<1x18x18x4xbf16, #tpu.memory_space<vmem>>, vector<1x8x16x4xbf16>
    %12 = vector.shape_cast %11 : vector<1x8x16x4xbf16> to vector<8x16x4xbf16>
    %13 = vector.shape_cast %12 : vector<8x16x4xbf16> to vector<128x4xbf16>
    %c0_6 = arith.constant 0 : index
    %c0_7 = arith.constant 0 : index
    %14 = vector.load %arg8[%c0_6, %c0_7] : memref<128x36xbf16, #tpu.memory_space<vmem>>, vector<128x4xbf16>
    tpu.vector_store %arg8[%c0_6, %c0_7], %13 {strides = array<i32>} : memref<128x36xbf16, #tpu.memory_space<vmem>>, vector<128x4xbf16>,
    %c0_i32_8 = arith.constant 0 : i32
    %15 = arith.addi %8, %c0_i32_8 : i32
    %c0_9 = arith.constant 0 : index
    %16 = arith.index_cast %15 : i32 to index
    %c1 = arith.constant 1 : index
    %c0_10 = arith.constant 0 : index
    %17 = vector.load %arg3[%c0_9, %16, %c1, %c0_10] : memref<1x18x18x4xbf16, #tpu.memory_space<vmem>>, vector<1x8x16x4xbf16>
    %18 = vector.shape_cast %17 : vector<1x8x16x4xbf16> to vector<8x16x4xbf16>
    %19 = vector.shape_cast %18 : vector<8x16x4xbf16> to vector<128x4xbf16>
    %c0_11 = arith.constant 0 : index
    %c4 = arith.constant 4 : index
    %20 = vector.load %arg8[%c0_11, %c4] : memref<128x36xbf16, #tpu.memory_space<vmem>>, vector<128x4xbf16>
    tpu.vector_store %arg8[%c0_11, %c4], %19 {strides = array<i32>} : memref<128x36xbf16, #tpu.memory_space<vmem>>, vector<128x4xbf16>,
    %c0_i32_12 = arith.constant 0 : i32
    %21 = arith.addi %8, %c0_i32_12 : i32
    %c0_13 = arith.constant 0 : index
    %22 = arith.index_cast %21 : i32 to index
    %c2 = arith.constant 2 : index
    %c0_14 = arith.constant 0 : index
    %23 = vector.load %arg3[%c0_13, %22, %c2, %c0_14] : memref<1x18x18x4xbf16, #tpu.memory_space<vmem>>, vector<1x8x16x4xbf16>
    %24 = vector.shape_cast %23 : vector<1x8x16x4xbf16> to vector<8x16x4xbf16>
    %25 = vector.shape_cast %24 : vector<8x16x4xbf16> to vector<128x4xbf16>
    %c0_15 = arith.constant 0 : index
    %c8 = arith.constant 8 : index
    %26 = vector.load %arg8[%c0_15, %c8] : memref<128x36xbf16, #tpu.memory_space<vmem>>, vector<128x4xbf16>
    tpu.vector_store %arg8[%c0_15, %c8], %25 {strides = array<i32>} : memref<128x36xbf16, #tpu.memory_space<vmem>>, vector<128x4xbf16>,
    %c1_i32 = arith.constant 1 : i32
    %27 = arith.addi %8, %c1_i32 : i32
    %c0_16 = arith.constant 0 : index
    %28 = arith.index_cast %27 : i32 to index
    %c0_17 = arith.constant 0 : index
    %c0_18 = arith.constant 0 : index
    %29 = vector.load %arg3[%c0_16, %28, %c0_17, %c0_18] : memref<1x18x18x4xbf16, #tpu.memory_space<vmem>>, vector<1x8x16x4xbf16>
    %30 = vector.shape_cast %29 : vector<1x8x16x4xbf16> to vector<8x16x4xbf16>
    %31 = vector.shape_cast %30 : vector<8x16x4xbf16> to vector<128x4xbf16>
    %c0_19 = arith.constant 0 : index
    %c12 = arith.constant 12 : index
    %32 = vector.load %arg8[%c0_19, %c12] : memref<128x36xbf16, #tpu.memory_space<vmem>>, vector<128x4xbf16>
    tpu.vector_store %arg8[%c0_19, %c12], %31 {strides = array<i32>} : memref<128x36xbf16, #tpu.memory_space<vmem>>, vector<128x4xbf16>,
    %c1_i32_20 = arith.constant 1 : i32
    %33 = arith.addi %8, %c1_i32_20 : i32
    %c0_21 = arith.constant 0 : index
    %34 = arith.index_cast %33 : i32 to index
    %c1_22 = arith.constant 1 : index
    %c0_23 = arith.constant 0 : index
    %35 = vector.load %arg3[%c0_21, %34, %c1_22, %c0_23] : memref<1x18x18x4xbf16, #tpu.memory_space<vmem>>, vector<1x8x16x4xbf16>
    %36 = vector.shape_cast %35 : vector<1x8x16x4xbf16> to vector<8x16x4xbf16>
    %37 = vector.shape_cast %36 : vector<8x16x4xbf16> to vector<128x4xbf16>
    %c0_24 = arith.constant 0 : index
    %c16 = arith.constant 16 : index
    %38 = vector.load %arg8[%c0_24, %c16] : memref<128x36xbf16, #tpu.memory_space<vmem>>, vector<128x4xbf16>
    tpu.vector_store %arg8[%c0_24, %c16], %37 {strides = array<i32>} : memref<128x36xbf16, #tpu.memory_space<vmem>>, vector<128x4xbf16>,
    %c1_i32_25 = arith.constant 1 : i32
    %39 = arith.addi %8, %c1_i32_25 : i32
    %c0_26 = arith.constant 0 : index
    %40 = arith.index_cast %39 : i32 to index
    %c2_27 = arith.constant 2 : index
    %c0_28 = arith.constant 0 : index
    %41 = vector.load %arg3[%c0_26, %40, %c2_27, %c0_28] : memref<1x18x18x4xbf16, #tpu.memory_space<vmem>>, vector<1x8x16x4xbf16>
    %42 = vector.shape_cast %41 : vector<1x8x16x4xbf16> to vector<8x16x4xbf16>
    %43 = vector.shape_cast %42 : vector<8x16x4xbf16> to vector<128x4xbf16>
    %c0_29 = arith.constant 0 : index
    %c20 = arith.constant 20 : index
    %44 = vector.load %arg8[%c0_29, %c20] : memref<128x36xbf16, #tpu.memory_space<vmem>>, vector<128x4xbf16>
    tpu.vector_store %arg8[%c0_29, %c20], %43 {strides = array<i32>} : memref<128x36xbf16, #tpu.memory_space<vmem>>, vector<128x4xbf16>,
    %c2_i32 = arith.constant 2 : i32
    %45 = arith.addi %8, %c2_i32 : i32
    %c0_30 = arith.constant 0 : index
    %46 = arith.index_cast %45 : i32 to index
    %c0_31 = arith.constant 0 : index
    %c0_32 = arith.constant 0 : index
    %47 = vector.load %arg3[%c0_30, %46, %c0_31, %c0_32] : memref<1x18x18x4xbf16, #tpu.memory_space<vmem>>, vector<1x8x16x4xbf16>
    %48 = vector.shape_cast %47 : vector<1x8x16x4xbf16> to vector<8x16x4xbf16>
    %49 = vector.shape_cast %48 : vector<8x16x4xbf16> to vector<128x4xbf16>
    %c0_33 = arith.constant 0 : index
    %c24 = arith.constant 24 : index
    %50 = vector.load %arg8[%c0_33, %c24] : memref<128x36xbf16, #tpu.memory_space<vmem>>, vector<128x4xbf16>
    tpu.vector_store %arg8[%c0_33, %c24], %49 {strides = array<i32>} : memref<128x36xbf16, #tpu.memory_space<vmem>>, vector<128x4xbf16>,
    %c2_i32_34 = arith.constant 2 : i32
    %51 = arith.addi %8, %c2_i32_34 : i32
    %c0_35 = arith.constant 0 : index
    %52 = arith.index_cast %51 : i32 to index
    %c1_36 = arith.constant 1 : index
    %c0_37 = arith.constant 0 : index
    %53 = vector.load %arg3[%c0_35, %52, %c1_36, %c0_37] : memref<1x18x18x4xbf16, #tpu.memory_space<vmem>>, vector<1x8x16x4xbf16>
    %54 = vector.shape_cast %53 : vector<1x8x16x4xbf16> to vector<8x16x4xbf16>
    %55 = vector.shape_cast %54 : vector<8x16x4xbf16> to vector<128x4xbf16>
    %c0_38 = arith.constant 0 : index
    %c28 = arith.constant 28 : index
    %56 = vector.load %arg8[%c0_38, %c28] : memref<128x36xbf16, #tpu.memory_space<vmem>>, vector<128x4xbf16>
    tpu.vector_store %arg8[%c0_38, %c28], %55 {strides = array<i32>} : memref<128x36xbf16, #tpu.memory_space<vmem>>, vector<128x4xbf16>,
    %c2_i32_39 = arith.constant 2 : i32
    %57 = arith.addi %8, %c2_i32_39 : i32
    %c0_40 = arith.constant 0 : index
    %58 = arith.index_cast %57 : i32 to index
    %c2_41 = arith.constant 2 : index
    %c0_42 = arith.constant 0 : index
    %59 = vector.load %arg3[%c0_40, %58, %c2_41, %c0_42] : memref<1x18x18x4xbf16, #tpu.memory_space<vmem>>, vector<1x8x16x4xbf16>
    %60 = vector.shape_cast %59 : vector<1x8x16x4xbf16> to vector<8x16x4xbf16>
    %61 = vector.shape_cast %60 : vector<8x16x4xbf16> to vector<128x4xbf16>
    %c0_43 = arith.constant 0 : index
    %c32 = arith.constant 32 : index
    %62 = vector.load %arg8[%c0_43, %c32] : memref<128x36xbf16, #tpu.memory_space<vmem>>, vector<128x4xbf16>
    tpu.vector_store %arg8[%c0_43, %c32], %61 {strides = array<i32>} : memref<128x36xbf16, #tpu.memory_space<vmem>>, vector<128x4xbf16>,
    %c0_44 = arith.constant 0 : index
    %c0_45 = arith.constant 0 : index
    %63 = vector.load %arg8[%c0_44, %c0_45] : memref<128x36xbf16, #tpu.memory_space<vmem>>, vector<128x36xbf16>
    %c0_46 = arith.constant 0 : index
    %c0_47 = arith.constant 0 : index
    %64 = vector.load %arg4[%c0_46, %c0_47] : memref<36x8xbf16, #tpu.memory_space<vmem>>, vector<36x8xbf16>
    %cst = arith.constant dense<0.000000e+00> : vector<128x8xf32>
    %65 = tpu.matmul %63, %64, %cst {dimension_numbers = #tpu.dot_dimension_numbers<[1], [0], [0], [1], [0, 0, 1, 1], [], []>} : vector<128x36xbf16>, vector<36x8xbf16>, vector<128x8xf32> -> vector<128x8xf32>
    %c0_i32_48 = arith.constant 0 : i32
    %66 = arith.cmpi eq, %arg0, %c0_i32_48 : i32
    %67 = arith.extui %66 : i1 to i32
    %c0_i32_49 = arith.constant 0 : i32
    %68 = arith.cmpi ne, %67, %c0_i32_49 : i32
    scf.if %68 {
      %c0_52 = arith.constant 0 : index
      %c0_53 = arith.constant 0 : index
      %72 = vector.load %arg9[%c0_52, %c0_53] : memref<1x8xf32, #tpu.memory_space<vmem>>, vector<1x8xf32>
      %cst_54 = arith.constant dense<0.000000e+00> : vector<8xf32>
      %73 = vector.multi_reduction <add>, %65, %cst_54 [0] : vector<128x8xf32> to vector<8xf32>
      %74 = vector.shape_cast %73 : vector<8xf32> to vector<1x8xf32>
      %75 = arith.addf %72, %74 : vector<1x8xf32>
      %c0_55 = arith.constant 0 : index
      %c0_56 = arith.constant 0 : index
      %76 = vector.load %arg9[%c0_55, %c0_56] : memref<1x8xf32, #tpu.memory_space<vmem>>, vector<1x8xf32>
      tpu.vector_store %arg9[%c0_55, %c0_56], %75 {strides = array<i32>} : memref<1x8xf32, #tpu.memory_space<vmem>>, vector<1x8xf32>,
      %c0_57 = arith.constant 0 : index
      %c0_58 = arith.constant 0 : index
      %77 = vector.load %arg10[%c0_57, %c0_58] : memref<1x8xf32, #tpu.memory_space<vmem>>, vector<1x8xf32>
      %78 = arith.mulf %65, %65 : vector<128x8xf32>
      %cst_59 = arith.constant dense<0.000000e+00> : vector<8xf32>
      %79 = vector.multi_reduction <add>, %78, %cst_59 [0] : vector<128x8xf32> to vector<8xf32>
      %80 = vector.shape_cast %79 : vector<8xf32> to vector<1x8xf32>
      %81 = arith.addf %77, %80 : vector<1x8xf32>
      %c0_60 = arith.constant 0 : index
      %c0_61 = arith.constant 0 : index
      %82 = vector.load %arg10[%c0_60, %c0_61] : memref<1x8xf32, #tpu.memory_space<vmem>>, vector<1x8xf32>
      tpu.vector_store %arg10[%c0_60, %c0_61], %81 {strides = array<i32>} : memref<1x8xf32, #tpu.memory_space<vmem>>, vector<1x8xf32>,
    } else {
    }
    %c1_i32_50 = arith.constant 1 : i32
    %69 = arith.cmpi eq, %arg0, %c1_i32_50 : i32
    %70 = arith.extui %69 : i1 to i32
    %c0_i32_51 = arith.constant 0 : i32
    %71 = arith.cmpi ne, %70, %c0_i32_51 : i32
    scf.if %71 {
      %c0_52 = arith.constant 0 : index
      %c0_53 = arith.constant 0 : index
      %72 = vector.load %arg9[%c0_52, %c0_53] : memref<1x8xf32, #tpu.memory_space<vmem>>, vector<1x8xf32>
      %cst_54 = arith.constant 0.001953125 : f32
      %73 = vector.broadcast %cst_54 : f32 to vector<1x8xf32>
      %74 = arith.mulf %72, %73 : vector<1x8xf32>
      %c0_55 = arith.constant 0 : index
      %c0_56 = arith.constant 0 : index
      %75 = vector.load %arg10[%c0_55, %c0_56] : memref<1x8xf32, #tpu.memory_space<vmem>>, vector<1x8xf32>
      %cst_57 = arith.constant 0.001953125 : f32
      %76 = vector.broadcast %cst_57 : f32 to vector<1x8xf32>
      %77 = arith.mulf %75, %76 : vector<1x8xf32>
      %78 = arith.mulf %74, %74 : vector<1x8xf32>
      %79 = arith.subf %77, %78 : vector<1x8xf32>
      %c0_58 = arith.constant 0 : index
      %c0_59 = arith.constant 0 : index
      %80 = vector.load %arg5[%c0_58, %c0_59] : memref<1x8xf32, #tpu.memory_space<vmem>>, vector<1x8xf32>
      %cst_60 = arith.constant 9.99999974E-6 : f32
      %81 = vector.broadcast %cst_60 : f32 to vector<1x8xf32>
      %82 = arith.addf %79, %81 : vector<1x8xf32>
      %83 = math.rsqrt %82 : vector<1x8xf32>
      %84 = arith.mulf %80, %83 : vector<1x8xf32>
      %c0_61 = arith.constant 0 : index
      %c0_62 = arith.constant 0 : index
      %85 = vector.load %arg6[%c0_61, %c0_62] : memref<1x8xf32, #tpu.memory_space<vmem>>, vector<1x8xf32>
      %86 = arith.mulf %74, %84 : vector<1x8xf32>
      %87 = arith.subf %85, %86 : vector<1x8xf32>
      %88 = vector.broadcast %84 : vector<1x8xf32> to vector<128x8xf32>
      %89 = arith.mulf %65, %88 : vector<128x8xf32>
      %90 = vector.broadcast %87 : vector<1x8xf32> to vector<128x8xf32>
      %91 = arith.addf %89, %90 : vector<128x8xf32>
      %cst_63 = arith.constant 0.000000e+00 : f32
      %92 = vector.broadcast %cst_63 : f32 to vector<128x8xf32>
      %93 = arith.maximumf %91, %92 : vector<128x8xf32>
      %c0_64 = arith.constant 0 : index
      %c0_65 = arith.constant 0 : index
      %94 = vector.load %arg7[%c0_64, %c0_65] : memref<128x8xf32, #tpu.memory_space<vmem>>, vector<128x8xf32>
      tpu.vector_store %arg7[%c0_64, %c0_65], %93 {strides = array<i32>} : memref<128x8xf32, #tpu.memory_space<vmem>>, vector<128x8xf32>,
    } else {
    }
    return
  }
  func.func @transform_0(%arg0: i32, %arg1: i32, %arg2: i32) -> (i32, i32, i32, i32) {
    %c0_i32 = arith.constant 0 : i32
    %c0_i32_0 = arith.constant 0 : i32
    %c0_i32_1 = arith.constant 0 : i32
    %c0_i32_2 = arith.constant 0 : i32
    return %arg1, %c0_i32, %c0_i32_0, %c0_i32_1 : i32, i32, i32, i32
  }
  func.func @transform_1(%arg0: i32, %arg1: i32, %arg2: i32) -> (i32, i32) {
    %c0_i32 = arith.constant 0 : i32
    %c0_i32_0 = arith.constant 0 : i32
    %c0_i32_1 = arith.constant 0 : i32
    return %c0_i32, %c0_i32_0 : i32, i32
  }
  func.func @transform_2(%arg0: i32, %arg1: i32, %arg2: i32) -> (i32, i32) {
    %c0_i32 = arith.constant 0 : i32
    %c0_i32_0 = arith.constant 0 : i32
    %c0_i32_1 = arith.constant 0 : i32
    return %c0_i32, %c0_i32_0 : i32, i32
  }
  func.func @transform_3(%arg0: i32, %arg1: i32, %arg2: i32) -> (i32, i32) {
    %c0_i32 = arith.constant 0 : i32
    %c0_i32_0 = arith.constant 0 : i32
    %c0_i32_1 = arith.constant 0 : i32
    return %c0_i32, %c0_i32_0 : i32, i32
  }
  func.func @transform_4(%arg0: i32, %arg1: i32, %arg2: i32) -> (i32, i32) {
    %c2_i32 = arith.constant 2 : i32
    %0 = arith.muli %arg1, %c2_i32 : i32
    %1 = arith.addi %0, %arg2 : i32
    %2 = arith.muli %1, %arg0 : i32
    %c0_i32 = arith.constant 0 : i32
    %c0_i32_0 = arith.constant 0 : i32
    return %2, %c0_i32 : i32, i32
  }
}

</mosaic_0001>

<llo_original>
// kernel: conv_bn_relu.1
$region0: #{conv_bn_relu.1}
  #allocation0 [shape = 'u32[]', space=smem, size = 0x4, offset = 0x4, fixed_abs, tag = 'smem constant byte address 0x4 - core index']
  #allocation1 [shape = 'u32[144,128]{1,0:T(1,128)}', space=vmem, size = 0x12000, scoped, tag = 'internal scratch']
  #allocation2 [shape = 'bf16[128,36]{1,0:T(8,128)(2,1)}', space=vmem, size = 0x8000, scoped, tag = 'scratch operand']
  #allocation3 [shape = 'f32[1,8]{1,0:T(1,128)}', space=vmem, size = 0x200, scoped, tag = 'scratch operand']
  #allocation4 [shape = 'f32[1,8]{1,0:T(1,128)}', space=vmem, size = 0x200, scoped, tag = 'scratch operand']
  %s0 = inlined_call_operand.vmem [shape: bf16[2,18,18,4], index: 0, kind: input, shape index: {}]
  %s1 = inlined_call_operand.vmem [shape: bf16[36,8], index: 1, kind: input, shape index: {}]
  %s2 = inlined_call_operand.vmem [shape: f32[1,8], index: 2, kind: input, shape index: {}]
  %s3 = inlined_call_operand.vmem [shape: f32[1,8], index: 3, kind: input, shape index: {}]
  %s4 = inlined_call_operand.vmem [shape: f32[512,8], index: 4, kind: output, shape index: {}]
  %s5 = sld [smem:[#allocation0]]
  $region61: #{conv_bn_relu.1} parent=0
    _
  %s7 = ssub.s32 1, %s5
  %s8 = scalar_select 0, %s7, %s5
  loop: start=0, step=1, limit=10
  $region2: #{conv_bn_relu.1} parent=0 // loop_pre_header
    _
  $region3: #{conv_bn_relu.1} parent=0 // loop_header
    %s10 = sphi 0, %s14
    %p11 = scmp.ge.s32.totalorder %s10, 10
    %s17 = sphi 0, %s36
    %s18 = sphi 0, %s32
    %s19 = sphi 0, %s28
    %s20 = sphi 0, %s17
    %s21 = sphi 0, %s18
    %s22 = sphi 0, %s19
    %s23 = sphi 0, %s20
    %s24 = sphi 0, %s21
    %s25 = sphi 0, %s22
    %s39 = sphi 0, %s41
    %s42 = sphi 0, %s39
    %s43 = sphi 0, %s42
    %s59 = sphi 0, %s43
    %s63 = sphi 0, %s63
    %s65 = sphi 0, %s63
    %s66 = sphi 0, %s65
    %s80 = sphi 0, %s66
    %s84 = sphi 0, %s84
    %s86 = sphi 0, %s84
    %s87 = sphi 0, %s86
    %s101 = sphi 0, %s87
    %s105 = sphi 0, %s105
    %s107 = sphi 0, %s105
    %s108 = sphi 0, %s107
    %s122 = sphi 0, %s108
    %s134 = sphi 0, %s136
    %s137 = sphi 0, %s134
    %s138 = sphi 0, %s137
    %s154 = sphi 0, %s138
  $region4: #{conv_bn_relu.1} parent=0 // loop_header_branch
    %13 = sbr.rel (%p11) target = $region8
  $region5: #{conv_bn_relu.1} parent=0 // loop_body
    %s15 = ssub.s32 %s10, 1
    %s16 = ssub.s32 %s10, 2
    %s26 = sadd.s32 1, %s19
    %p27 = scmp.ge.s32.totalorder %s26, 2
    %s28 = scalar_select %p27, 0, %s26
    %s29 = sadd.s32 1, %s18
    %s30 = scalar_select %p27, %s29, %s18
    %p31 = scmp.ge.s32.totalorder %s30, 2
    %s32 = scalar_select %p31, 0, %s30
    %s33 = sadd.s32 1, %s17
    %s34 = scalar_select %p31, %s33, %s17
    %p35 = scmp.ge.s32.totalorder %s34, 2
    %s36 = scalar_select %p35, 0, %s34
    %s37 = ssub.s32 %s18, %s32
    %p38 = scmp.eq.s32.totalorder %s37, 0
    %s40 = sadd.s32 %s39, 1
    %s41 = scalar_select %p38, %s39, %s40
    %p44 = pneg %p38
    %p45 = scmp.eq.s32.totalorder %s10, 7
    %p46 = por %p44, %p45
    %p47 = scmp.ne.s32.totalorder %s39, %s42
    %p48 = scmp.eq.s32.totalorder %s10, 0
    %p49 = por %p47, %p48
    %p50 = scmp.ne.s32.totalorder %s39, %s42
    %p51 = scmp.eq.s32.totalorder %s15, 7
    %p52 = por %p50, %p51
    %p53 = scmp.ne.s32.totalorder %s42, %s43
    %p54 = scmp.eq.s32.totalorder %s15, 0
    %p55 = por %p53, %p54
    %p56 = scmp.ne.s32.totalorder %s42, %s43
    %p57 = scmp.eq.s32.totalorder %s16, 7
    %p58 = por %p56, %p57
    %p60 = scmp.ne.s32.totalorder %s43, %s59
    %p61 = scmp.eq.s32.totalorder %s16, 0
    %p62 = por %p60, %p61
    %s64 = sadd.s32 %s63, 1
    %p67 = scmp.eq.s32.totalorder %s10, 7
    %p68 = scmp.ne.s32.totalorder %s63, %s65
    %p69 = scmp.eq.s32.totalorder %s10, 0
    %p70 = por %p68, %p69
    %p71 = scmp.ne.s32.totalorder %s63, %s65
    %p72 = scmp.eq.s32.totalorder %s15, 7
    %p73 = por %p71, %p72
    %p74 = scmp.ne.s32.totalorder %s65, %s66
    %p75 = scmp.eq.s32.totalorder %s15, 0
    %p76 = por %p74, %p75
    %p77 = scmp.ne.s32.totalorder %s65, %s66
    %p78 = scmp.eq.s32.totalorder %s16, 7
    %p79 = por %p77, %p78
    %p81 = scmp.ne.s32.totalorder %s66, %s80
    %p82 = scmp.eq.s32.totalorder %s16, 0
    %p83 = por %p81, %p82
    %s85 = sadd.s32 %s84, 1
    %p88 = scmp.eq.s32.totalorder %s10, 7
    %p89 = scmp.ne.s32.totalorder %s84, %s86
    %p90 = scmp.eq.s32.totalorder %s10, 0
    %p91 = por %p89, %p90
    %p92 = scmp.ne.s32.totalorder %s84, %s86
    %p93 = scmp.eq.s32.totalorder %s15, 7
    %p94 = por %p92, %p93
    %p95 = scmp.ne.s32.totalorder %s86, %s87
    %p96 = scmp.eq.s32.totalorder %s15, 0
    %p97 = por %p95, %p96
    %p98 = scmp.ne.s32.totalorder %s86, %s87
    %p99 = scmp.eq.s32.totalorder %s16, 7
    %p100 = por %p98, %p99
    %p102 = scmp.ne.s32.totalorder %s87, %s101
    %p103 = scmp.eq.s32.totalorder %s16, 0
    %p104 = por %p102, %p103
    %s106 = sadd.s32 %s105, 1
    %p109 = scmp.eq.s32.totalorder %s10, 7
    %p110 = scmp.ne.s32.totalorder %s105, %s107
    %p111 = scmp.eq.s32.totalorder %s10, 0
    %p112 = por %p110, %p111
    %p113 = scmp.ne.s32.totalorder %s105, %s107
    %p114 = scmp.eq.s32.totalorder %s15, 7
    %p115 = por %p113, %p114
    %p116 = scmp.ne.s32.totalorder %s107, %s108
    %p117 = scmp.eq.s32.totalorder %s15, 0
    %p118 = por %p116, %p117
    %p119 = scmp.ne.s32.totalorder %s107, %s108
    %p120 = scmp.eq.s32.totalorder %s16, 7
    %p121 = por %p119, %p120
    %p123 = scmp.ne.s32.totalorder %s108, %s122
    %p124 = scmp.eq.s32.totalorder %s16, 0
    %p125 = por %p123, %p124
    %s126 = smul.u32 %s18, 2
    %s127 = sadd.s32 %s126, %s19
    %s128 = smul.u32 %s127, %s17
    %s129 = smul.u32 %s32, 2
    %s130 = sadd.s32 %s129, %s28
    %s131 = smul.u32 %s130, %s36
    %s132 = ssub.s32 %s128, %s131
    %p133 = scmp.eq.s32.totalorder %s132, 0
    %s135 = sadd.s32 %s134, 1
    %s136 = scalar_select %p133, %s134, %s135
    %p139 = pneg %p133
    %p140 = scmp.eq.s32.totalorder %s10, 7
    %p141 = por %p139, %p140
    %p142 = scmp.ne.s32.totalorder %s134, %s137
    %p143 = scmp.eq.s32.totalorder %s10, 0
    %p144 = por %p142, %p143
    %p145 = scmp.ne.s32.totalorder %s134, %s137
    %p146 = scmp.eq.s32.totalorder %s15, 7
    %p147 = por %p145, %p146
    %p148 = scmp.ne.s32.totalorder %s137, %s138
    %p149 = scmp.eq.s32.totalorder %s15, 0
    %p150 = por %p148, %p149
    %p151 = scmp.ne.s32.totalorder %s137, %s138
    %p152 = scmp.eq.s32.totalorder %s16, 7
    %p153 = por %p151, %p152
    %p155 = scmp.ne.s32.totalorder %s138, %s154
    %p156 = scmp.eq.s32.totalorder %s16, 0
    %p157 = por %p155, %p156
    %p158 = scmp.le.s32.totalorder 1, %s10
    %p159 = scmp.lt.s32.totalorder %s10, 9
    %p160 = pnand %p158, %p159
    %p161 = pneg %p160
    // Predicated region
    $region9: #{conv_bn_relu.1} parent=5 // pred_check
      _
    $region10: #{conv_bn_relu.1} parent=5 // pred_check_branch
      %163 = sbr.rel (%p160) target = $region12
    $region11: #{conv_bn_relu.1} parent=5 // pred_region
      %s164 = ssub.s32 %s10, 1
      // Predicated region
      $region13: #{conv_bn_relu.1} parent=11 // pred_check
        %p165 = pneg %p76
      $region14: #{conv_bn_relu.1} parent=11 // pred_check_branch
        %167 = sbr.rel (%p165) target = $region16
      $region15: #{conv_bn_relu.1} parent=11 // pred_region
        _
      $region16: #{conv_bn_relu.1} parent=11 // pred_fallthru
        _
      // Predicated region
      $region17: #{conv_bn_relu.1} parent=11 // pred_check
        %p168 = pneg %p97
      $region18: #{conv_bn_relu.1} parent=11 // pred_check_branch
        %170 = sbr.rel (%p168) target = $region20
      $region19: #{conv_bn_relu.1} parent=11 // pred_region
        _
      $region20: #{conv_bn_relu.1} parent=11 // pred_fallthru
        _
      // Predicated region
      $region21: #{conv_bn_relu.1} parent=11 // pred_check
        %p171 = pneg %p118
      $region22: #{conv_bn_relu.1} parent=11 // pred_check_branch
        %173 = sbr.rel (%p171) target = $region24
      $region23: #{conv_bn_relu.1} parent=11 // pred_region
        _
      $region24: #{conv_bn_relu.1} parent=11 // pred_fallthru
        _
    $region12: #{conv_bn_relu.1} parent=5 // pred_fallthru
      _
    %p174 = scmp.lt.s32.totalorder %s10, 8
    // Predicated region
    $region25: #{conv_bn_relu.1} parent=5 // pred_check
      %p175 = pneg %p174
    $region26: #{conv_bn_relu.1} parent=5 // pred_check_branch
      %177 = sbr.rel (%p175) target = $region28
    $region27: #{conv_bn_relu.1} parent=5 // pred_region
      // Predicated region
      $region29: #{conv_bn_relu.1} parent=27 // pred_check
        %p178 = pneg %p49
      $region30: #{conv_bn_relu.1} parent=27 // pred_check_branch
        %180 = sbr.rel (%p178) target = $region32
      $region31: #{conv_bn_relu.1} parent=27 // pred_region
        %p181 = scmp.lt.s32.totalorder %s18, 1
        %s182 = scalar_select %p181, %s18, 1
        %s183 = smul.addr %s182, 54
        %s184 = smul.addr %s183, 4
        %s185 = scalar_lea.vmem %s0, %s184
      $region32: #{conv_bn_relu.1} parent=27 // pred_fallthru
        _
    $region28: #{conv_bn_relu.1} parent=5 // pred_fallthru
      _
    %p186 = scmp.le.s32.totalorder 1, %s10
    %p187 = scmp.lt.s32.totalorder %s10, 9
    %p188 = pnand %p186, %p187
    %p189 = pneg %p188
    // Predicated region
    $region33: #{conv_bn_relu.1} parent=5 // pred_check
      _
    $region34: #{conv_bn_relu.1} parent=5 // pred_check_branch
      %191 = sbr.rel (%p188) target = $region36
    $region35: #{conv_bn_relu.1} parent=5 // pred_region
      %s192 = ssub.s32 %s10, 1
      %p193 = scmp.lt.s32.totalorder %s21, 1
      %s194 = scalar_select %p193, %s21, 1
      %s195 = smul.addr %s194, 54
      %s196 = smul.addr %s195, 4
      %s197 = scalar_lea.vmem %s0, %s196
      %p198 = pneg %p55
      %p199 = pneg %p52
      %p200 = pneg %p76
      %p201 = pneg %p73
      %p202 = pneg %p97
      %p203 = pneg %p94
      %p204 = pneg %p118
      %p205 = pneg %p115
      %p206 = pneg %p150
      %p207 = pneg %p147
      %s208 = smul.u32 %s21, 2
      %s209 = sadd.s32 %s208, %s22
      %s210 = smul.u32 %s209, %s20
      %s211 = smul.u32 16, %s210
      %p212 = scmp.lt.s32.totalorder %s211, 63
      %s213 = scalar_select %p212, %s211, 63
      %s214 = smul.addr %s213, 8
      %s215 = scalar_lea.vmem %s4, %s214
      %p216 = scmp.lt.s32.totalorder %s21, 1
      %s217 = scalar_select %p216, %s21, 1
      %s218 = smul.addr %s217, 54
      %s219 = smul.addr %s218, 4
      %s220 = scalar_lea.vmem %s0, %s219
      %s221 = smul.u32 %s21, 2
      %s222 = sadd.s32 %s221, %s22
      %s223 = smul.u32 %s222, %s20
      %s224 = smul.u32 16, %s223
      %p225 = scmp.lt.s32.totalorder %s224, 63
      %s226 = scalar_select %p225, %s224, 63
      %s227 = smul.addr %s226, 8
      %s228 = scalar_lea.vmem %s4, %s227
      %s229 = smul.u32 %s21, 2
      %s230 = sadd.s32 %s229, %s22
      %s231 = smul.u32 %s230, %s20
      %s232 = smul.u32 16, %s231
      %p234 = scmp.eq.s32.totalorder %s20, 0
      %p235 = scmp.eq.s32.totalorder %s21, 0
      %p236 = pnand %p234, %p235
      %p237 = pneg %p236
      %p238 = scmp.eq.s32.totalorder %s22, 0
      %p239 = pnand %p237, %p238
      %p240 = pneg %p239
      // Predicated region
      $region37: #{conv_bn_relu.1} parent=35 // pred_check
        _
      $region38: #{conv_bn_relu.1} parent=35 // pred_check_branch
        %242 = sbr.rel (%p239) target = $region40
      $region39: #{conv_bn_relu.1} parent=35 // pred_region
        %vm243 = vcmask 57344
        %244 = vst.msk [vmem:[#allocation3] sm:$0x1] %vm243, 0.0
        %245 = vst.msk [vmem:[#allocation4] sm:$0x1] %vm243, 0.0
      $region40: #{conv_bn_relu.1} parent=35 // pred_fallthru
        _
      %s246 = smul.u32 %s22, 8
      %s247 = smul.u32 %s246, 3
      %s248 = smul.addr %s247, 4
      %s249 = scalar_lea.vmem %s220, %s248
      %v250 = vld [vmem:[%s249] sm:$0xf]
      %v251 = vld [vmem:[%s249 + $0x4] sm:$0xf]
      %v252 = vld [vmem:[%s249 + $0xc] sm:$0xf]
      %v253 = vld [vmem:[%s249 + $0x10] sm:$0xf]
      %v254 = vld [vmem:[%s249 + $0x18] sm:$0xf]
      %v255 = vld [vmem:[%s249 + $0x1c] sm:$0xf]
      %v256 = vld [vmem:[%s249 + $0x24] sm:$0xf]
      %v257 = vld [vmem:[%s249 + $0x28] sm:$0xf]
      %v258 = vld [vmem:[%s249 + $0x30] sm:$0xf]
      %v259 = vld [vmem:[%s249 + $0x34] sm:$0xf]
      %v260 = vld [vmem:[%s249 + $0x3c] sm:$0xf]
      %v261 = vld [vmem:[%s249 + $0x40] sm:$0xf]
      %v262 = vld [vmem:[%s249 + $0x48] sm:$0xf]
      %v263 = vld [vmem:[%s249 + $0x4c] sm:$0xf]
      %v264 = vld [vmem:[%s249 + $0x54] sm:$0xf]
      %v265 = vld [vmem:[%s249 + $0x58] sm:$0xf]
      %vm266 = vcmask 27648
      %267 = vst.msk [vmem:[#allocation2] sm:$0xf] %vm266, %v250
      %268 = vst.msk [vmem:[#allocation2 + $0x4] sm:$0xf] %vm266, %v251
      %269 = vst.msk [vmem:[#allocation2 + $0x8] sm:$0xf] %vm266, %v252
      %270 = vst.msk [vmem:[#allocation2 + $0xc] sm:$0xf] %vm266, %v253
      %271 = vst.msk [vmem:[#allocation2 + $0x10] sm:$0xf] %vm266, %v254
      %272 = vst.msk [vmem:[#allocation2 + $0x14] sm:$0xf] %vm266, %v255
      %273 = vst.msk [vmem:[#allocation2 + $0x18] sm:$0xf] %vm266, %v256
      %274 = vst.msk [vmem:[#allocation2 + $0x1c] sm:$0xf] %vm266, %v257
      %275 = vst.msk [vmem:[#allocation2 + $0x20] sm:$0xf] %vm266, %v258
      %276 = vst.msk [vmem:[#allocation2 + $0x24] sm:$0xf] %vm266, %v259
      %277 = vst.msk [vmem:[#allocation2 + $0x28] sm:$0xf] %vm266, %v260
      %278 = vst.msk [vmem:[#allocation2 + $0x2c] sm:$0xf] %vm266, %v261
      %279 = vst.msk [vmem:[#allocation2 + $0x30] sm:$0xf] %vm266, %v262
      %280 = vst.msk [vmem:[#allocation2 + $0x34] sm:$0xf] %vm266, %v263
      %281 = vst.msk [vmem:[#allocation2 + $0x38] sm:$0xf] %vm266, %v264
      %282 = vst.msk [vmem:[#allocation2 + $0x3c] sm:$0xf] %vm266, %v265
      %v283 = vld [vmem:[%s249] sm:$0xf]
      %v284 = vld [vmem:[%s249 + $0x4] sm:$0xf]
      %v285 = vld [vmem:[%s249 + $0x8] sm:$0x1]
      %v286 = vld [vmem:[%s249 + $0xc] sm:$0xf]
      %v287 = vld [vmem:[%s249 + $0x10] sm:$0xf]
      %v288 = vld [vmem:[%s249 + $0x14] sm:$0x1]
      %v289 = vld [vmem:[%s249 + $0x18] sm:$0xf]
      %v290 = vld [vmem:[%s249 + $0x1c] sm:$0xf]
      %v291 = vld [vmem:[%s249 + $0x20] sm:$0x1]
      %v292 = vld [vmem:[%s249 + $0x24] sm:$0xf]
      %v293 = vld [vmem:[%s249 + $0x28] sm:$0xf]
      %v294 = vld [vmem:[%s249 + $0x2c] sm:$0x1]
      %v295 = vld [vmem:[%s249 + $0x30] sm:$0xf]
      %v296 = vld [vmem:[%s249 + $0x34] sm:$0xf]
      %v297 = vld [vmem:[%s249 + $0x38] sm:$0x1]
      %v298 = vld [vmem:[%s249 + $0x3c] sm:$0xf]
      %v299 = vld [vmem:[%s249 + $0x40] sm:$0xf]
      %v300 = vld [vmem:[%s249 + $0x44] sm:$0x1]
      %v301 = vld [vmem:[%s249 + $0x48] sm:$0xf]
      %v302 = vld [vmem:[%s249 + $0x4c] sm:$0xf]
      %v303 = vld [vmem:[%s249 + $0x50] sm:$0x1]
      %v304 = vld [vmem:[%s249 + $0x54] sm:$0xf]
      %v305 = vld [vmem:[%s249 + $0x58] sm:$0xf]
      %v306 = vld [vmem:[%s249 + $0x5c] sm:$0x1]
      %vm307 = vsmask.f32 3328
      %vm308 = vsmask.f32 7440
      %vm309 = vmor %vm307, %vm308
      %v311 = vshrl.u32 %v283, 16
      %v313 = vrot.slane %v311, 4
      %v314 = vshll.u32 %v283, 16
      %v316 = vrot.slane %v314, 5
      %v317 = vor.u32 %v313, %v316
      %v318 = vrot.slane %v317, 4
      %v320 = vshll.u32 %v284, 16
      %v322 = vrot.slane %v320, 5
      %v323 = vsel %vm309, %v318, %v322
      %v324 = vshrl.u32 %v284, 16
      %v326 = vrot.slane %v324, 4
      %v327 = vor.u32 %v326, %v322
      %v328 = vrot.slane %v327, 4
      %v330 = vshll.u32 %v285, 16
      %v332 = vrot.slane %v330, 5
      %v333 = vsel %vm309, %v328, %v332
      %v335 = vshrl.u32 %v286, 16
      %v337 = vrot.slane %v335, 4
      %v338 = vshll.u32 %v286, 16
      %v340 = vrot.slane %v338, 5
      %v341 = vor.u32 %v337, %v340
      %v342 = vrot.slane %v341, 4
      %v344 = vshll.u32 %v287, 16
      %v346 = vrot.slane %v344, 5
      %v347 = vsel %vm309, %v342, %v346
      %v348 = vshrl.u32 %v287, 16
      %v350 = vrot.slane %v348, 4
      %v351 = vor.u32 %v350, %v346
      %v352 = vrot.slane %v351, 4
      %v354 = vshll.u32 %v288, 16
      %v356 = vrot.slane %v354, 5
      %v357 = vsel %vm309, %v352, %v356
      %v359 = vshrl.u32 %v289, 16
      %v361 = vrot.slane %v359, 4
      %v362 = vshll.u32 %v289, 16
      %v364 = vrot.slane %v362, 5
      %v365 = vor.u32 %v361, %v364
      %v366 = vrot.slane %v365, 4
      %v368 = vshll.u32 %v290, 16
      %v370 = vrot.slane %v368, 5
      %v371 = vsel %vm309, %v366, %v370
      %v372 = vshrl.u32 %v290, 16
      %v374 = vrot.slane %v372, 4
      %v375 = vor.u32 %v374, %v370
      %v376 = vrot.slane %v375, 4
      %v378 = vshll.u32 %v291, 16
      %v380 = vrot.slane %v378, 5
      %v381 = vsel %vm309, %v376, %v380
      %v383 = vshrl.u32 %v292, 16
      %v385 = vrot.slane %v383, 4
      %v386 = vshll.u32 %v292, 16
      %v388 = vrot.slane %v386, 5
      %v389 = vor.u32 %v385, %v388
      %v390 = vrot.slane %v389, 4
      %v392 = vshll.u32 %v293, 16
      %v394 = vrot.slane %v392, 5
      %v395 = vsel %vm309, %v390, %v394
      %v396 = vshrl.u32 %v293, 16
      %v398 = vrot.slane %v396, 4
      %v399 = vor.u32 %v398, %v394
      %v400 = vrot.slane %v399, 4
      %v402 = vshll.u32 %v294, 16
      %v404 = vrot.slane %v402, 5
      %v405 = vsel %vm309, %v400, %v404
      %v407 = vshrl.u32 %v295, 16
      %v409 = vrot.slane %v407, 4
      %v410 = vshll.u32 %v295, 16
      %v412 = vrot.slane %v410, 5
      %v413 = vor.u32 %v409, %v412
      %v414 = vrot.slane %v413, 4
      %v416 = vshll.u32 %v296, 16
      %v418 = vrot.slane %v416, 5
      %v419 = vsel %vm309, %v414, %v418
      %v420 = vshrl.u32 %v296, 16
      %v422 = vrot.slane %v420, 4
      %v423 = vor.u32 %v422, %v418
      %v424 = vrot.slane %v423, 4
      %v426 = vshll.u32 %v297, 16
      %v428 = vrot.slane %v426, 5
      %v429 = vsel %vm309, %v424, %v428
      %v431 = vshrl.u32 %v298, 16
      %v433 = vrot.slane %v431, 4
      %v434 = vshll.u32 %v298, 16
      %v436 = vrot.slane %v434, 5
      %v437 = vor.u32 %v433, %v436
      %v438 = vrot.slane %v437, 4
      %v440 = vshll.u32 %v299, 16
      %v442 = vrot.slane %v440, 5
      %v443 = vsel %vm309, %v438, %v442
      %v444 = vshrl.u32 %v299, 16
      %v446 = vrot.slane %v444, 4
      %v447 = vor.u32 %v446, %v442
      %v448 = vrot.slane %v447, 4
      %v450 = vshll.u32 %v300, 16
      %v452 = vrot.slane %v450, 5
      %v453 = vsel %vm309, %v448, %v452
      %v455 = vshrl.u32 %v301, 16
      %v457 = vrot.slane %v455, 4
      %v458 = vshll.u32 %v301, 16
      %v460 = vrot.slane %v458, 5
      %v461 = vor.u32 %v457, %v460
      %v462 = vrot.slane %v461, 4
      %v464 = vshll.u32 %v302, 16
      %v466 = vrot.slane %v464, 5
      %v467 = vsel %vm309, %v462, %v466
      %v468 = vshrl.u32 %v302, 16
      %v470 = vrot.slane %v468, 4
      %v471 = vor.u32 %v470, %v466
      %v472 = vrot.slane %v471, 4
      %v474 = vshll.u32 %v303, 16
      %v476 = vrot.slane %v474, 5
      %v477 = vsel %vm309, %v472, %v476
      %v479 = vshrl.u32 %v304, 16
      %v481 = vrot.slane %v479, 4
      %v482 = vshll.u32 %v304, 16
      %v484 = vrot.slane %v482, 5
      %v485 = vor.u32 %v481, %v484
      %v486 = vrot.slane %v485, 4
      %v488 = vshll.u32 %v305, 16
      %v490 = vrot.slane %v488, 5
      %v491 = vsel %vm309, %v486, %v490
      %v492 = vshrl.u32 %v305, 16
      %v494 = vrot.slane %v492, 4
      %v495 = vor.u32 %v494, %v490
      %v496 = vrot.slane %v495, 4
      %v498 = vshll.u32 %v306, 16
      %v500 = vrot.slane %v498, 5
      %v501 = vsel %vm309, %v496, %v500
      %502 = vrot.lane.b32.xlu0 %v323, 4
      %v503 = vpop.permute.xlu0 %502
      %504 = vrot.lane.b32.xlu0 %v333, 4
      %v505 = vpop.permute.xlu0 %504
      %506 = vrot.lane.b32.xlu0 %v347, 4
      %v507 = vpop.permute.xlu0 %506
      %508 = vrot.lane.b32.xlu0 %v357, 4
      %v509 = vpop.permute.xlu0 %508
      %510 = vrot.lane.b32.xlu0 %v371, 4
      %v511 = vpop.permute.xlu0 %510
      %512 = vrot.lane.b32.xlu0 %v381, 4
      %v513 = vpop.permute.xlu0 %512
      %514 = vrot.lane.b32.xlu0 %v395, 4
      %v515 = vpop.permute.xlu0 %514
      %516 = vrot.lane.b32.xlu0 %v405, 4
      %v517 = vpop.permute.xlu0 %516
      %518 = vrot.lane.b32.xlu0 %v419, 4
      %v519 = vpop.permute.xlu0 %518
      %520 = vrot.lane.b32.xlu0 %v429, 4
      %v521 = vpop.permute.xlu0 %520
      %522 = vrot.lane.b32.xlu0 %v443, 4
      %v523 = vpop.permute.xlu0 %522
      %524 = vrot.lane.b32.xlu0 %v453, 4
      %v525 = vpop.permute.xlu0 %524
      %526 = vrot.lane.b32.xlu0 %v467, 4
      %v527 = vpop.permute.xlu0 %526
      %528 = vrot.lane.b32.xlu0 %v477, 4
      %v529 = vpop.permute.xlu0 %528
      %530 = vrot.lane.b32.xlu0 %v491, 4
      %v531 = vpop.permute.xlu0 %530
      %532 = vrot.lane.b32.xlu0 %v501, 4
      %v533 = vpop.permute.xlu0 %532
      %vm550 = vcmask 60448
      %551 = vst.msk [vmem:[#allocation2] sm:$0xf] %vm550, %v503
      %552 = vst.msk [vmem:[#allocation2 + $0x4] sm:$0xf] %vm550, %v505
      %553 = vst.msk [vmem:[#allocation2 + $0x8] sm:$0xf] %vm550, %v507
      %554 = vst.msk [vmem:[#allocation2 + $0xc] sm:$0xf] %vm550, %v509
      %555 = vst.msk [vmem:[#allocation2 + $0x10] sm:$0xf] %vm550, %v511
      %556 = vst.msk [vmem:[#allocation2 + $0x14] sm:$0xf] %vm550, %v513
      %557 = vst.msk [vmem:[#allocation2 + $0x18] sm:$0xf] %vm550, %v515
      %558 = vst.msk [vmem:[#allocation2 + $0x1c] sm:$0xf] %vm550, %v517
      %559 = vst.msk [vmem:[#allocation2 + $0x20] sm:$0xf] %vm550, %v519
      %560 = vst.msk [vmem:[#allocation2 + $0x24] sm:$0xf] %vm550, %v521
      %561 = vst.msk [vmem:[#allocation2 + $0x28] sm:$0xf] %vm550, %v523
      %562 = vst.msk [vmem:[#allocation2 + $0x2c] sm:$0xf] %vm550, %v525
      %563 = vst.msk [vmem:[#allocation2 + $0x30] sm:$0xf] %vm550, %v527
      %564 = vst.msk [vmem:[#allocation2 + $0x34] sm:$0xf] %vm550, %v529
      %565 = vst.msk [vmem:[#allocation2 + $0x38] sm:$0xf] %vm550, %v531
      %566 = vst.msk [vmem:[#allocation2 + $0x3c] sm:$0xf] %vm550, %v533
      %v567 = vld [vmem:[%s249] sm:$0xe]
      %v568 = vld [vmem:[%s249 + $0x4] sm:$0xf]
      %v569 = vld [vmem:[%s249 + $0x8] sm:$0x1]
      %v570 = vld [vmem:[%s249 + $0xc] sm:$0xe]
      %v571 = vld [vmem:[%s249 + $0x10] sm:$0xf]
      %v572 = vld [vmem:[%s249 + $0x14] sm:$0x1]
      %v573 = vld [vmem:[%s249 + $0x18] sm:$0xe]
      %v574 = vld [vmem:[%s249 + $0x1c] sm:$0xf]
      %v575 = vld [vmem:[%s249 + $0x20] sm:$0x1]
      %v576 = vld [vmem:[%s249 + $0x24] sm:$0xe]
      %v577 = vld [vmem:[%s249 + $0x28] sm:$0xf]
      %v578 = vld [vmem:[%s249 + $0x2c] sm:$0x1]
      %v579 = vld [vmem:[%s249 + $0x30] sm:$0xe]
      %v580 = vld [vmem:[%s249 + $0x34] sm:$0xf]
      %v581 = vld [vmem:[%s249 + $0x38] sm:$0x1]
      %v582 = vld [vmem:[%s249 + $0x3c] sm:$0xe]
      %v583 = vld [vmem:[%s249 + $0x40] sm:$0xf]
      %v584 = vld [vmem:[%s249 + $0x44] sm:$0x1]
      %v585 = vld [vmem:[%s249 + $0x48] sm:$0xe]
      %v586 = vld [vmem:[%s249 + $0x4c] sm:$0xf]
      %v587 = vld [vmem:[%s249 + $0x50] sm:$0x1]
      %v588 = vld [vmem:[%s249 + $0x54] sm:$0xe]
      %v589 = vld [vmem:[%s249 + $0x58] sm:$0xf]
      %v590 = vld [vmem:[%s249 + $0x5c] sm:$0x1]
      %vm615 = vcmask 1042432
      %vm616 = vcmask 1046532
      %vm617 = vmor %vm615, %vm616
      %v618 = vrot.slane %v567, 5
      %v619 = vrot.slane %v618, 4
      %v620 = vrot.slane %v568, 5
      %v621 = vsel %vm617, %v619, %v620
      %v622 = vrot.slane %v620, 4
      %v623 = vrot.slane %v569, 5
      %v624 = vsel %vm617, %v622, %v623
      %v625 = vrot.slane %v570, 5
      %v626 = vrot.slane %v625, 4
      %v627 = vrot.slane %v571, 5
      %v628 = vsel %vm617, %v626, %v627
      %v629 = vrot.slane %v627, 4
      %v630 = vrot.slane %v572, 5
      %v631 = vsel %vm617, %v629, %v630
      %v632 = vrot.slane %v573, 5
      %v633 = vrot.slane %v632, 4
      %v634 = vrot.slane %v574, 5
      %v635 = vsel %vm617, %v633, %v634
      %v636 = vrot.slane %v634, 4
      %v637 = vrot.slane %v575, 5
      %v638 = vsel %vm617, %v636, %v637
      %v639 = vrot.slane %v576, 5
      %v640 = vrot.slane %v639, 4
      %v641 = vrot.slane %v577, 5
      %v642 = vsel %vm617, %v640, %v641
      %v643 = vrot.slane %v641, 4
      %v644 = vrot.slane %v578, 5
      %v645 = vsel %vm617, %v643, %v644
      %v646 = vrot.slane %v579, 5
      %v647 = vrot.slane %v646, 4
      %v648 = vrot.slane %v580, 5
      %v649 = vsel %vm617, %v647, %v648
      %v650 = vrot.slane %v648, 4
      %v651 = vrot.slane %v581, 5
      %v652 = vsel %vm617, %v650, %v651
      %v653 = vrot.slane %v582, 5
      %v654 = vrot.slane %v653, 4
      %v655 = vrot.slane %v583, 5
      %v656 = vsel %vm617, %v654, %v655
      %v657 = vrot.slane %v655, 4
      %v658 = vrot.slane %v584, 5
      %v659 = vsel %vm617, %v657, %v658
      %v660 = vrot.slane %v585, 5
      %v661 = vrot.slane %v660, 4
      %v662 = vrot.slane %v586, 5
      %v663 = vsel %vm617, %v661, %v662
      %v664 = vrot.slane %v662, 4
      %v665 = vrot.slane %v587, 5
      %v666 = vsel %vm617, %v664, %v665
      %v667 = vrot.slane %v588, 5
      %v668 = vrot.slane %v667, 4
      %v669 = vrot.slane %v589, 5
      %v670 = vsel %vm617, %v668, %v669
      %v671 = vrot.slane %v669, 4
      %v672 = vrot.slane %v590, 5
      %v673 = vsel %vm617, %v671, %v672
      %674 = vrot.lane.b32.xlu0 %v621, 8
      %v675 = vpop.permute.xlu0 %674
      %676 = vrot.lane.b32.xlu0 %v624, 8
      %v677 = vpop.permute.xlu0 %676
      %678 = vrot.lane.b32.xlu0 %v628, 8
      %v679 = vpop.permute.xlu0 %678
      %680 = vrot.lane.b32.xlu0 %v631, 8
      %v681 = vpop.permute.xlu0 %680
      %682 = vrot.lane.b32.xlu0 %v635, 8
      %v683 = vpop.permute.xlu0 %682
      %684 = vrot.lane.b32.xlu0 %v638, 8
      %v685 = vpop.permute.xlu0 %684
      %686 = vrot.lane.b32.xlu0 %v642, 8
      %v687 = vpop.permute.xlu0 %686
      %688 = vrot.lane.b32.xlu0 %v645, 8
      %v689 = vpop.permute.xlu0 %688
      %690 = vrot.lane.b32.xlu0 %v649, 8
      %v691 = vpop.permute.xlu0 %690
      %692 = vrot.lane.b32.xlu0 %v652, 8
      %v693 = vpop.permute.xlu0 %692
      %694 = vrot.lane.b32.xlu0 %v656, 8
      %v695 = vpop.permute.xlu0 %694
      %696 = vrot.lane.b32.xlu0 %v659, 8
      %v697 = vpop.permute.xlu0 %696
      %698 = vrot.lane.b32.xlu0 %v663, 8
      %v699 = vpop.permute.xlu0 %698
      %700 = vrot.lane.b32.xlu0 %v666, 8
      %v701 = vpop.permute.xlu0 %700
      %702 = vrot.lane.b32.xlu0 %v670, 8
      %v703 = vpop.permute.xlu0 %702
      %704 = vrot.lane.b32.xlu0 %v673, 8
      %v705 = vpop.permute.xlu0 %704
      %vm722 = vcmask 93248
      %723 = vst.msk [vmem:[#allocation2] sm:$0xf] %vm722, %v675
      %724 = vst.msk [vmem:[#allocation2 + $0x4] sm:$0xf] %vm722, %v677
      %725 = vst.msk [vmem:[#allocation2 + $0x8] sm:$0xf] %vm722, %v679
      %726 = vst.msk [vmem:[#allocation2 + $0xc] sm:$0xf] %vm722, %v681
      %727 = vst.msk [vmem:[#allocation2 + $0x10] sm:$0xf] %vm722, %v683
      %728 = vst.msk [vmem:[#allocation2 + $0x14] sm:$0xf] %vm722, %v685
      %729 = vst.msk [vmem:[#allocation2 + $0x18] sm:$0xf] %vm722, %v687
      %730 = vst.msk [vmem:[#allocation2 + $0x1c] sm:$0xf] %vm722, %v689
      %731 = vst.msk [vmem:[#allocation2 + $0x20] sm:$0xf] %vm722, %v691
      %732 = vst.msk [vmem:[#allocation2 + $0x24] sm:$0xf] %vm722, %v693
      %733 = vst.msk [vmem:[#allocation2 + $0x28] sm:$0xf] %vm722, %v695
      %734 = vst.msk [vmem:[#allocation2 + $0x2c] sm:$0xf] %vm722, %v697
      %735 = vst.msk [vmem:[#allocation2 + $0x30] sm:$0xf] %vm722, %v699
      %736 = vst.msk [vmem:[#allocation2 + $0x34] sm:$0xf] %vm722, %v701
      %737 = vst.msk [vmem:[#allocation2 + $0x38] sm:$0xf] %vm722, %v703
      %738 = vst.msk [vmem:[#allocation2 + $0x3c] sm:$0xf] %vm722, %v705
      %s739 = sadd.s32 %s246, 1
      %s740 = smul.u32 %s739, 3
      %s741 = smul.addr %s740, 4
      %s742 = scalar_lea.vmem %s220, %s741
      %v743 = vld [vmem:[%s742] sm:$0xf]
      %v744 = vld [vmem:[%s742 + $0x4] sm:$0xf]
      %v745 = vld [vmem:[%s742 + $0xc] sm:$0xf]
      %v746 = vld [vmem:[%s742 + $0x10] sm:$0xf]
      %v747 = vld [vmem:[%s742 + $0x18] sm:$0xf]
      %v748 = vld [vmem:[%s742 + $0x1c] sm:$0xf]
      %v749 = vld [vmem:[%s742 + $0x24] sm:$0xf]
      %v750 = vld [vmem:[%s742 + $0x28] sm:$0xf]
      %v751 = vld [vmem:[%s742 + $0x30] sm:$0xf]
      %v752 = vld [vmem:[%s742 + $0x34] sm:$0xf]
      %v753 = vld [vmem:[%s742 + $0x3c] sm:$0xf]
      %v754 = vld [vmem:[%s742 + $0x40] sm:$0xf]
      %v755 = vld [vmem:[%s742 + $0x48] sm:$0xf]
      %v756 = vld [vmem:[%s742 + $0x4c] sm:$0xf]
      %v757 = vld [vmem:[%s742 + $0x54] sm:$0xf]
      %v758 = vld [vmem:[%s742 + $0x58] sm:$0xf]
      %775 = vrot.lane.b32.xlu0 %v743, 12
      %v776 = vpop.permute.xlu0 %775
      %777 = vrot.lane.b32.xlu0 %v744, 12
      %v778 = vpop.permute.xlu0 %777
      %779 = vrot.lane.b32.xlu0 %v745, 12
      %v780 = vpop.permute.xlu0 %779
      %781 = vrot.lane.b32.xlu0 %v746, 12
      %v782 = vpop.permute.xlu0 %781
      %783 = vrot.lane.b32.xlu0 %v747, 12
      %v784 = vpop.permute.xlu0 %783
      %785 = vrot.lane.b32.xlu0 %v748, 12
      %v786 = vpop.permute.xlu0 %785
      %787 = vrot.lane.b32.xlu0 %v749, 12
      %v788 = vpop.permute.xlu0 %787
      %789 = vrot.lane.b32.xlu0 %v750, 12
      %v790 = vpop.permute.xlu0 %789
      %791 = vrot.lane.b32.xlu0 %v751, 12
      %v792 = vpop.permute.xlu0 %791
      %793 = vrot.lane.b32.xlu0 %v752, 12
      %v794 = vpop.permute.xlu0 %793
      %795 = vrot.lane.b32.xlu0 %v753, 12
      %v796 = vpop.permute.xlu0 %795
      %797 = vrot.lane.b32.xlu0 %v754, 12
      %v798 = vpop.permute.xlu0 %797
      %799 = vrot.lane.b32.xlu0 %v755, 12
      %v800 = vpop.permute.xlu0 %799
      %801 = vrot.lane.b32.xlu0 %v756, 12
      %v802 = vpop.permute.xlu0 %801
      %803 = vrot.lane.b32.xlu0 %v757, 12
      %v804 = vpop.permute.xlu0 %803
      %805 = vrot.lane.b32.xlu0 %v758, 12
      %v806 = vpop.permute.xlu0 %805
      %vm823 = vcmask 126048
      %824 = vst.msk [vmem:[#allocation2] sm:$0xf] %vm823, %v776
      %825 = vst.msk [vmem:[#allocation2 + $0x4] sm:$0xf] %vm823, %v778
      %826 = vst.msk [vmem:[#allocation2 + $0x8] sm:$0xf] %vm823, %v780
      %827 = vst.msk [vmem:[#allocation2 + $0xc] sm:$0xf] %vm823, %v782
      %828 = vst.msk [vmem:[#allocation2 + $0x10] sm:$0xf] %vm823, %v784
      %829 = vst.msk [vmem:[#allocation2 + $0x14] sm:$0xf] %vm823, %v786
      %830 = vst.msk [vmem:[#allocation2 + $0x18] sm:$0xf] %vm823, %v788
      %831 = vst.msk [vmem:[#allocation2 + $0x1c] sm:$0xf] %vm823, %v790
      %832 = vst.msk [vmem:[#allocation2 + $0x20] sm:$0xf] %vm823, %v792
      %833 = vst.msk [vmem:[#allocation2 + $0x24] sm:$0xf] %vm823, %v794
      %834 = vst.msk [vmem:[#allocation2 + $0x28] sm:$0xf] %vm823, %v796
      %835 = vst.msk [vmem:[#allocation2 + $0x2c] sm:$0xf] %vm823, %v798
      %836 = vst.msk [vmem:[#allocation2 + $0x30] sm:$0xf] %vm823, %v800
      %837 = vst.msk [vmem:[#allocation2 + $0x34] sm:$0xf] %vm823, %v802
      %838 = vst.msk [vmem:[#allocation2 + $0x38] sm:$0xf] %vm823, %v804
      %839 = vst.msk [vmem:[#allocation2 + $0x3c] sm:$0xf] %vm823, %v806
      %v840 = vld [vmem:[%s742] sm:$0xf]
      %v841 = vld [vmem:[%s742 + $0x4] sm:$0xf]
      %v842 = vld [vmem:[%s742 + $0x8] sm:$0x1]
      %v843 = vld [vmem:[%s742 + $0xc] sm:$0xf]
      %v844 = vld [vmem:[%s742 + $0x10] sm:$0xf]
      %v845 = vld [vmem:[%s742 + $0x14] sm:$0x1]
      %v846 = vld [vmem:[%s742 + $0x18] sm:$0xf]
      %v847 = vld [vmem:[%s742 + $0x1c] sm:$0xf]
      %v848 = vld [vmem:[%s742 + $0x20] sm:$0x1]
      %v849 = vld [vmem:[%s742 + $0x24] sm:$0xf]
      %v850 = vld [vmem:[%s742 + $0x28] sm:$0xf]
      %v851 = vld [vmem:[%s742 + $0x2c] sm:$0x1]
      %v852 = vld [vmem:[%s742 + $0x30] sm:$0xf]
      %v853 = vld [vmem:[%s742 + $0x34] sm:$0xf]
      %v854 = vld [vmem:[%s742 + $0x38] sm:$0x1]
      %v855 = vld [vmem:[%s742 + $0x3c] sm:$0xf]
      %v856 = vld [vmem:[%s742 + $0x40] sm:$0xf]
      %v857 = vld [vmem:[%s742 + $0x44] sm:$0x1]
      %v858 = vld [vmem:[%s742 + $0x48] sm:$0xf]
      %v859 = vld [vmem:[%s742 + $0x4c] sm:$0xf]
      %v860 = vld [vmem:[%s742 + $0x50] sm:$0x1]
      %v861 = vld [vmem:[%s742 + $0x54] sm:$0xf]
      %v862 = vld [vmem:[%s742 + $0x58] sm:$0xf]
      %v863 = vld [vmem:[%s742 + $0x5c] sm:$0x1]
      %v865 = vshrl.u32 %v840, 16
      %v867 = vrot.slane %v865, 4
      %v868 = vshll.u32 %v840, 16
      %v870 = vrot.slane %v868, 5
      %v871 = vor.u32 %v867, %v870
      %v872 = vrot.slane %v871, 4
      %v874 = vshll.u32 %v841, 16
      %v876 = vrot.slane %v874, 5
      %v877 = vsel %vm309, %v872, %v876
      %v878 = vshrl.u32 %v841, 16
      %v880 = vrot.slane %v878, 4
      %v881 = vor.u32 %v880, %v876
      %v882 = vrot.slane %v881, 4
      %v884 = vshll.u32 %v842, 16
      %v886 = vrot.slane %v884, 5
      %v887 = vsel %vm309, %v882, %v886
      %v889 = vshrl.u32 %v843, 16
      %v891 = vrot.slane %v889, 4
      %v892 = vshll.u32 %v843, 16
      %v894 = vrot.slane %v892, 5
      %v895 = vor.u32 %v891, %v894
      %v896 = vrot.slane %v895, 4
      %v898 = vshll.u32 %v844, 16
      %v900 = vrot.slane %v898, 5
      %v901 = vsel %vm309, %v896, %v900
      %v902 = vshrl.u32 %v844, 16
      %v904 = vrot.slane %v902, 4
      %v905 = vor.u32 %v904, %v900
      %v906 = vrot.slane %v905, 4
      %v908 = vshll.u32 %v845, 16
      %v910 = vrot.slane %v908, 5
      %v911 = vsel %vm309, %v906, %v910
      %v913 = vshrl.u32 %v846, 16
      %v915 = vrot.slane %v913, 4
      %v916 = vshll.u32 %v846, 16
      %v918 = vrot.slane %v916, 5
      %v919 = vor.u32 %v915, %v918
      %v920 = vrot.slane %v919, 4
      %v922 = vshll.u32 %v847, 16
      %v924 = vrot.slane %v922, 5
      %v925 = vsel %vm309, %v920, %v924
      %v926 = vshrl.u32 %v847, 16
      %v928 = vrot.slane %v926, 4
      %v929 = vor.u32 %v928, %v924
      %v930 = vrot.slane %v929, 4
      %v932 = vshll.u32 %v848, 16
      %v934 = vrot.slane %v932, 5
      %v935 = vsel %vm309, %v930, %v934
      %v937 = vshrl.u32 %v849, 16
      %v939 = vrot.slane %v937, 4
      %v940 = vshll.u32 %v849, 16
      %v942 = vrot.slane %v940, 5
      %v943 = vor.u32 %v939, %v942
      %v944 = vrot.slane %v943, 4
      %v946 = vshll.u32 %v850, 16
      %v948 = vrot.slane %v946, 5
      %v949 = vsel %vm309, %v944, %v948
      %v950 = vshrl.u32 %v850, 16
      %v952 = vrot.slane %v950, 4
      %v953 = vor.u32 %v952, %v948
      %v954 = vrot.slane %v953, 4
      %v956 = vshll.u32 %v851, 16
      %v958 = vrot.slane %v956, 5
      %v959 = vsel %vm309, %v954, %v958
      %v961 = vshrl.u32 %v852, 16
      %v963 = vrot.slane %v961, 4
      %v964 = vshll.u32 %v852, 16
      %v966 = vrot.slane %v964, 5
      %v967 = vor.u32 %v963, %v966
      %v968 = vrot.slane %v967, 4
      %v970 = vshll.u32 %v853, 16
      %v972 = vrot.slane %v970, 5
      %v973 = vsel %vm309, %v968, %v972
      %v974 = vshrl.u32 %v853, 16
      %v976 = vrot.slane %v974, 4
      %v977 = vor.u32 %v976, %v972
      %v978 = vrot.slane %v977, 4
      %v980 = vshll.u32 %v854, 16
      %v982 = vrot.slane %v980, 5
      %v983 = vsel %vm309, %v978, %v982
      %v985 = vshrl.u32 %v855, 16
      %v987 = vrot.slane %v985, 4
      %v988 = vshll.u32 %v855, 16
      %v990 = vrot.slane %v988, 5
      %v991 = vor.u32 %v987, %v990
      %v992 = vrot.slane %v991, 4
      %v994 = vshll.u32 %v856, 16
      %v996 = vrot.slane %v994, 5
      %v997 = vsel %vm309, %v992, %v996
      %v998 = vshrl.u32 %v856, 16
      %v1000 = vrot.slane %v998, 4
      %v1001 = vor.u32 %v1000, %v996
      %v1002 = vrot.slane %v1001, 4
      %v1004 = vshll.u32 %v857, 16
      %v1006 = vrot.slane %v1004, 5
      %v1007 = vsel %vm309, %v1002, %v1006
      %v1009 = vshrl.u32 %v858, 16
      %v1011 = vrot.slane %v1009, 4
      %v1012 = vshll.u32 %v858, 16
      %v1014 = vrot.slane %v1012, 5
      %v1015 = vor.u32 %v1011, %v1014
      %v1016 = vrot.slane %v1015, 4
      %v1018 = vshll.u32 %v859, 16
      %v1020 = vrot.slane %v1018, 5
      %v1021 = vsel %vm309, %v1016, %v1020
      %v1022 = vshrl.u32 %v859, 16
      %v1024 = vrot.slane %v1022, 4
      %v1025 = vor.u32 %v1024, %v1020
      %v1026 = vrot.slane %v1025, 4
      %v1028 = vshll.u32 %v860, 16
      %v1030 = vrot.slane %v1028, 5
      %v1031 = vsel %vm309, %v1026, %v1030
      %v1033 = vshrl.u32 %v861, 16
      %v1035 = vrot.slane %v1033, 4
      %v1036 = vshll.u32 %v861, 16
      %v1038 = vrot.slane %v1036, 5
      %v1039 = vor.u32 %v1035, %v1038
      %v1040 = vrot.slane %v1039, 4
      %v1042 = vshll.u32 %v862, 16
      %v1044 = vrot.slane %v1042, 5
      %v1045 = vsel %vm309, %v1040, %v1044
      %v1046 = vshrl.u32 %v862, 16
      %v1048 = vrot.slane %v1046, 4
      %v1049 = vor.u32 %v1048, %v1044
      %v1050 = vrot.slane %v1049, 4
      %v1052 = vshll.u32 %v863, 16
      %v1054 = vrot.slane %v1052, 5
      %v1055 = vsel %vm309, %v1050, %v1054
      %1056 = vrot.lane.b32.xlu0 %v877, 16
      %v1057 = vpop.permute.xlu0 %1056
      %1058 = vrot.lane.b32.xlu0 %v887, 16
      %v1059 = vpop.permute.xlu0 %1058
      %1060 = vrot.lane.b32.xlu0 %v901, 16
      %v1061 = vpop.permute.xlu0 %1060
      %1062 = vrot.lane.b32.xlu0 %v911, 16
      %v1063 = vpop.permute.xlu0 %1062
      %1064 = vrot.lane.b32.xlu0 %v925, 16
      %v1065 = vpop.permute.xlu0 %1064
      %1066 = vrot.lane.b32.xlu0 %v935, 16
      %v1067 = vpop.permute.xlu0 %1066
      %1068 = vrot.lane.b32.xlu0 %v949, 16
      %v1069 = vpop.permute.xlu0 %1068
      %1070 = vrot.lane.b32.xlu0 %v959, 16
      %v1071 = vpop.permute.xlu0 %1070
      %1072 = vrot.lane.b32.xlu0 %v973, 16
      %v1073 = vpop.permute.xlu0 %1072
      %1074 = vrot.lane.b32.xlu0 %v983, 16
      %v1075 = vpop.permute.xlu0 %1074
      %1076 = vrot.lane.b32.xlu0 %v997, 16
      %v1077 = vpop.permute.xlu0 %1076
      %1078 = vrot.lane.b32.xlu0 %v1007, 16
      %v1079 = vpop.permute.xlu0 %1078
      %1080 = vrot.lane.b32.xlu0 %v1021, 16
      %v1081 = vpop.permute.xlu0 %1080
      %1082 = vrot.lane.b32.xlu0 %v1031, 16
      %v1083 = vpop.permute.xlu0 %1082
      %1084 = vrot.lane.b32.xlu0 %v1045, 16
      %v1085 = vpop.permute.xlu0 %1084
      %1086 = vrot.lane.b32.xlu0 %v1055, 16
      %v1087 = vpop.permute.xlu0 %1086
      %vm1104 = vcmask 158848
      %1105 = vst.msk [vmem:[#allocation2] sm:$0xf] %vm1104, %v1057
      %1106 = vst.msk [vmem:[#allocation2 + $0x4] sm:$0xf] %vm1104, %v1059
      %1107 = vst.msk [vmem:[#allocation2 + $0x8] sm:$0xf] %vm1104, %v1061
      %1108 = vst.msk [vmem:[#allocation2 + $0xc] sm:$0xf] %vm1104, %v1063
      %1109 = vst.msk [vmem:[#allocation2 + $0x10] sm:$0xf] %vm1104, %v1065
      %1110 = vst.msk [vmem:[#allocation2 + $0x14] sm:$0xf] %vm1104, %v1067
      %1111 = vst.msk [vmem:[#allocation2 + $0x18] sm:$0xf] %vm1104, %v1069
      %1112 = vst.msk [vmem:[#allocation2 + $0x1c] sm:$0xf] %vm1104, %v1071
      %1113 = vst.msk [vmem:[#allocation2 + $0x20] sm:$0xf] %vm1104, %v1073
      %1114 = vst.msk [vmem:[#allocation2 + $0x24] sm:$0xf] %vm1104, %v1075
      %1115 = vst.msk [vmem:[#allocation2 + $0x28] sm:$0xf] %vm1104, %v1077
      %1116 = vst.msk [vmem:[#allocation2 + $0x2c] sm:$0xf] %vm1104, %v1079
      %1117 = vst.msk [vmem:[#allocation2 + $0x30] sm:$0xf] %vm1104, %v1081
      %1118 = vst.msk [vmem:[#allocation2 + $0x34] sm:$0xf] %vm1104, %v1083
      %1119 = vst.msk [vmem:[#allocation2 + $0x38] sm:$0xf] %vm1104, %v1085
      %1120 = vst.msk [vmem:[#allocation2 + $0x3c] sm:$0xf] %vm1104, %v1087
      %v1121 = vld [vmem:[%s742] sm:$0xe]
      %v1122 = vld [vmem:[%s742 + $0x4] sm:$0xf]
      %v1123 = vld [vmem:[%s742 + $0x8] sm:$0x1]
      %v1124 = vld [vmem:[%s742 + $0xc] sm:$0xe]
      %v1125 = vld [vmem:[%s742 + $0x10] sm:$0xf]
      %v1126 = vld [vmem:[%s742 + $0x14] sm:$0x1]
      %v1127 = vld [vmem:[%s742 + $0x18] sm:$0xe]
      %v1128 = vld [vmem:[%s742 + $0x1c] sm:$0xf]
      %v1129 = vld [vmem:[%s742 + $0x20] sm:$0x1]
      %v1130 = vld [vmem:[%s742 + $0x24] sm:$0xe]
      %v1131 = vld [vmem:[%s742 + $0x28] sm:$0xf]
      %v1132 = vld [vmem:[%s742 + $0x2c] sm:$0x1]
      %v1133 = vld [vmem:[%s742 + $0x30] sm:$0xe]
      %v1134 = vld [vmem:[%s742 + $0x34] sm:$0xf]
      %v1135 = vld [vmem:[%s742 + $0x38] sm:$0x1]
      %v1136 = vld [vmem:[%s742 + $0x3c] sm:$0xe]
      %v1137 = vld [vmem:[%s742 + $0x40] sm:$0xf]
      %v1138 = vld [vmem:[%s742 + $0x44] sm:$0x1]
      %v1139 = vld [vmem:[%s742 + $0x48] sm:$0xe]
      %v1140 = vld [vmem:[%s742 + $0x4c] sm:$0xf]
      %v1141 = vld [vmem:[%s742 + $0x50] sm:$0x1]
      %v1142 = vld [vmem:[%s742 + $0x54] sm:$0xe]
      %v1143 = vld [vmem:[%s742 + $0x58] sm:$0xf]
      %v1144 = vld [vmem:[%s742 + $0x5c] sm:$0x1]
      %v1169 = vrot.slane %v1121, 5
      %v1170 = vrot.slane %v1169, 4
      %v1171 = vrot.slane %v1122, 5
      %v1172 = vsel %vm617, %v1170, %v1171
      %v1173 = vrot.slane %v1171, 4
      %v1174 = vrot.slane %v1123, 5
      %v1175 = vsel %vm617, %v1173, %v1174
      %v1176 = vrot.slane %v1124, 5
      %v1177 = vrot.slane %v1176, 4
      %v1178 = vrot.slane %v1125, 5
      %v1179 = vsel %vm617, %v1177, %v1178
      %v1180 = vrot.slane %v1178, 4
      %v1181 = vrot.slane %v1126, 5
      %v1182 = vsel %vm617, %v1180, %v1181
      %v1183 = vrot.slane %v1127, 5
      %v1184 = vrot.slane %v1183, 4
      %v1185 = vrot.slane %v1128, 5
      %v1186 = vsel %vm617, %v1184, %v1185
      %v1187 = vrot.slane %v1185, 4
      %v1188 = vrot.slane %v1129, 5
      %v1189 = vsel %vm617, %v1187, %v1188
      %v1190 = vrot.slane %v1130, 5
      %v1191 = vrot.slane %v1190, 4
      %v1192 = vrot.slane %v1131, 5
      %v1193 = vsel %vm617, %v1191, %v1192
      %v1194 = vrot.slane %v1192, 4
      %v1195 = vrot.slane %v1132, 5
      %v1196 = vsel %vm617, %v1194, %v1195
      %v1197 = vrot.slane %v1133, 5
      %v1198 = vrot.slane %v1197, 4
      %v1199 = vrot.slane %v1134, 5
      %v1200 = vsel %vm617, %v1198, %v1199
      %v1201 = vrot.slane %v1199, 4
      %v1202 = vrot.slane %v1135, 5
      %v1203 = vsel %vm617, %v1201, %v1202
      %v1204 = vrot.slane %v1136, 5
      %v1205 = vrot.slane %v1204, 4
      %v1206 = vrot.slane %v1137, 5
      %v1207 = vsel %vm617, %v1205, %v1206
      %v1208 = vrot.slane %v1206, 4
      %v1209 = vrot.slane %v1138, 5
      %v1210 = vsel %vm617, %v1208, %v1209
      %v1211 = vrot.slane %v1139, 5
      %v1212 = vrot.slane %v1211, 4
      %v1213 = vrot.slane %v1140, 5
      %v1214 = vsel %vm617, %v1212, %v1213
      %v1215 = vrot.slane %v1213, 4
      %v1216 = vrot.slane %v1141, 5
      %v1217 = vsel %vm617, %v1215, %v1216
      %v1218 = vrot.slane %v1142, 5
      %v1219 = vrot.slane %v1218, 4
      %v1220 = vrot.slane %v1143, 5
      %v1221 = vsel %vm617, %v1219, %v1220
      %v1222 = vrot.slane %v1220, 4
      %v1223 = vrot.slane %v1144, 5
      %v1224 = vsel %vm617, %v1222, %v1223
      %1225 = vrot.lane.b32.xlu0 %v1172, 20
      %v1226 = vpop.permute.xlu0 %1225
      %1227 = vrot.lane.b32.xlu0 %v1175, 20
      %v1228 = vpop.permute.xlu0 %1227
      %1229 = vrot.lane.b32.xlu0 %v1179, 20
      %v1230 = vpop.permute.xlu0 %1229
      %1231 = vrot.lane.b32.xlu0 %v1182, 20
      %v1232 = vpop.permute.xlu0 %1231
      %1233 = vrot.lane.b32.xlu0 %v1186, 20
      %v1234 = vpop.permute.xlu0 %1233
      %1235 = vrot.lane.b32.xlu0 %v1189, 20
      %v1236 = vpop.permute.xlu0 %1235
      %1237 = vrot.lane.b32.xlu0 %v1193, 20
      %v1238 = vpop.permute.xlu0 %1237
      %1239 = vrot.lane.b32.xlu0 %v1196, 20
      %v1240 = vpop.permute.xlu0 %1239
      %1241 = vrot.lane.b32.xlu0 %v1200, 20
      %v1242 = vpop.permute.xlu0 %1241
      %1243 = vrot.lane.b32.xlu0 %v1203, 20
      %v1244 = vpop.permute.xlu0 %1243
      %1245 = vrot.lane.b32.xlu0 %v1207, 20
      %v1246 = vpop.permute.xlu0 %1245
      %1247 = vrot.lane.b32.xlu0 %v1210, 20
      %v1248 = vpop.permute.xlu0 %1247
      %1249 = vrot.lane.b32.xlu0 %v1214, 20
      %v1250 = vpop.permute.xlu0 %1249
      %1251 = vrot.lane.b32.xlu0 %v1217, 20
      %v1252 = vpop.permute.xlu0 %1251
      %1253 = vrot.lane.b32.xlu0 %v1221, 20
      %v1254 = vpop.permute.xlu0 %1253
      %1255 = vrot.lane.b32.xlu0 %v1224, 20
      %v1256 = vpop.permute.xlu0 %1255
      %vm1273 = vcmask 191648
      %1274 = vst.msk [vmem:[#allocation2] sm:$0xf] %vm1273, %v1226
      %1275 = vst.msk [vmem:[#allocation2 + $0x4] sm:$0xf] %vm1273, %v1228
      %1276 = vst.msk [vmem:[#allocation2 + $0x8] sm:$0xf] %vm1273, %v1230
      %1277 = vst.msk [vmem:[#allocation2 + $0xc] sm:$0xf] %vm1273, %v1232
      %1278 = vst.msk [vmem:[#allocation2 + $0x10] sm:$0xf] %vm1273, %v1234
      %1279 = vst.msk [vmem:[#allocation2 + $0x14] sm:$0xf] %vm1273, %v1236
      %1280 = vst.msk [vmem:[#allocation2 + $0x18] sm:$0xf] %vm1273, %v1238
      %1281 = vst.msk [vmem:[#allocation2 + $0x1c] sm:$0xf] %vm1273, %v1240
      %1282 = vst.msk [vmem:[#allocation2 + $0x20] sm:$0xf] %vm1273, %v1242
      %1283 = vst.msk [vmem:[#allocation2 + $0x24] sm:$0xf] %vm1273, %v1244
      %1284 = vst.msk [vmem:[#allocation2 + $0x28] sm:$0xf] %vm1273, %v1246
      %1285 = vst.msk [vmem:[#allocation2 + $0x2c] sm:$0xf] %vm1273, %v1248
      %1286 = vst.msk [vmem:[#allocation2 + $0x30] sm:$0xf] %vm1273, %v1250
      %1287 = vst.msk [vmem:[#allocation2 + $0x34] sm:$0xf] %vm1273, %v1252
      %1288 = vst.msk [vmem:[#allocation2 + $0x38] sm:$0xf] %vm1273, %v1254
      %1289 = vst.msk [vmem:[#allocation2 + $0x3c] sm:$0xf] %vm1273, %v1256
      %s1290 = sadd.s32 %s246, 2
      %s1291 = smul.u32 %s1290, 3
      %s1292 = smul.addr %s1291, 4
      %s1293 = scalar_lea.vmem %s220, %s1292
      %v1294 = vld [vmem:[%s1293] sm:$0xf]
      %v1295 = vld [vmem:[%s1293 + $0x4] sm:$0xf]
      %v1296 = vld [vmem:[%s1293 + $0xc] sm:$0xf]
      %v1297 = vld [vmem:[%s1293 + $0x10] sm:$0xf]
      %v1298 = vld [vmem:[%s1293 + $0x18] sm:$0xf]
      %v1299 = vld [vmem:[%s1293 + $0x1c] sm:$0xf]
      %v1300 = vld [vmem:[%s1293 + $0x24] sm:$0xf]
      %v1301 = vld [vmem:[%s1293 + $0x28] sm:$0xf]
      %v1302 = vld [vmem:[%s1293 + $0x30] sm:$0xf]
      %v1303 = vld [vmem:[%s1293 + $0x34] sm:$0xf]
      %v1304 = vld [vmem:[%s1293 + $0x3c] sm:$0xf]
      %v1305 = vld [vmem:[%s1293 + $0x40] sm:$0xf]
      %v1306 = vld [vmem:[%s1293 + $0x48] sm:$0xf]
      %v1307 = vld [vmem:[%s1293 + $0x4c] sm:$0xf]
      %v1308 = vld [vmem:[%s1293 + $0x54] sm:$0xf]
      %v1309 = vld [vmem:[%s1293 + $0x58] sm:$0xf]
      %1326 = vrot.lane.b32.xlu0 %v1294, 24
      %v1327 = vpop.permute.xlu0 %1326
      %1328 = vrot.lane.b32.xlu0 %v1295, 24
      %v1329 = vpop.permute.xlu0 %1328
      %1330 = vrot.lane.b32.xlu0 %v1296, 24
      %v1331 = vpop.permute.xlu0 %1330
      %1332 = vrot.lane.b32.xlu0 %v1297, 24
      %v1333 = vpop.permute.xlu0 %1332
      %1334 = vrot.lane.b32.xlu0 %v1298, 24
      %v1335 = vpop.permute.xlu0 %1334
      %1336 = vrot.lane.b32.xlu0 %v1299, 24
      %v1337 = vpop.permute.xlu0 %1336
      %1338 = vrot.lane.b32.xlu0 %v1300, 24
      %v1339 = vpop.permute.xlu0 %1338
      %1340 = vrot.lane.b32.xlu0 %v1301, 24
      %v1341 = vpop.permute.xlu0 %1340
      %1342 = vrot.lane.b32.xlu0 %v1302, 24
      %v1343 = vpop.permute.xlu0 %1342
      %1344 = vrot.lane.b32.xlu0 %v1303, 24
      %v1345 = vpop.permute.xlu0 %1344
      %1346 = vrot.lane.b32.xlu0 %v1304, 24
      %v1347 = vpop.permute.xlu0 %1346
      %1348 = vrot.lane.b32.xlu0 %v1305, 24
      %v1349 = vpop.permute.xlu0 %1348
      %1350 = vrot.lane.b32.xlu0 %v1306, 24
      %v1351 = vpop.permute.xlu0 %1350
      %1352 = vrot.lane.b32.xlu0 %v1307, 24
      %v1353 = vpop.permute.xlu0 %1352
      %1354 = vrot.lane.b32.xlu0 %v1308, 24
      %v1355 = vpop.permute.xlu0 %1354
      %1356 = vrot.lane.b32.xlu0 %v1309, 24
      %v1357 = vpop.permute.xlu0 %1356
      %vm1374 = vcmask 224448
      %1375 = vst.msk [vmem:[#allocation2] sm:$0xf] %vm1374, %v1327
      %1376 = vst.msk [vmem:[#allocation2 + $0x4] sm:$0xf] %vm1374, %v1329
      %1377 = vst.msk [vmem:[#allocation2 + $0x8] sm:$0xf] %vm1374, %v1331
      %1378 = vst.msk [vmem:[#allocation2 + $0xc] sm:$0xf] %vm1374, %v1333
      %1379 = vst.msk [vmem:[#allocation2 + $0x10] sm:$0xf] %vm1374, %v1335
      %1380 = vst.msk [vmem:[#allocation2 + $0x14] sm:$0xf] %vm1374, %v1337
      %1381 = vst.msk [vmem:[#allocation2 + $0x18] sm:$0xf] %vm1374, %v1339
      %1382 = vst.msk [vmem:[#allocation2 + $0x1c] sm:$0xf] %vm1374, %v1341
      %1383 = vst.msk [vmem:[#allocation2 + $0x20] sm:$0xf] %vm1374, %v1343
      %1384 = vst.msk [vmem:[#allocation2 + $0x24] sm:$0xf] %vm1374, %v1345
      %1385 = vst.msk [vmem:[#allocation2 + $0x28] sm:$0xf] %vm1374, %v1347
      %1386 = vst.msk [vmem:[#allocation2 + $0x2c] sm:$0xf] %vm1374, %v1349
      %1387 = vst.msk [vmem:[#allocation2 + $0x30] sm:$0xf] %vm1374, %v1351
      %1388 = vst.msk [vmem:[#allocation2 + $0x34] sm:$0xf] %vm1374, %v1353
      %1389 = vst.msk [vmem:[#allocation2 + $0x38] sm:$0xf] %vm1374, %v1355
      %1390 = vst.msk [vmem:[#allocation2 + $0x3c] sm:$0xf] %vm1374, %v1357
      %v1391 = vld [vmem:[%s1293] sm:$0xf]
      %v1392 = vld [vmem:[%s1293 + $0x4] sm:$0xf]
      %v1393 = vld [vmem:[%s1293 + $0x8] sm:$0x1]
      %v1394 = vld [vmem:[%s1293 + $0xc] sm:$0xf]
      %v1395 = vld [vmem:[%s1293 + $0x10] sm:$0xf]
      %v1396 = vld [vmem:[%s1293 + $0x14] sm:$0x1]
      %v1397 = vld [vmem:[%s1293 + $0x18] sm:$0xf]
      %v1398 = vld [vmem:[%s1293 + $0x1c] sm:$0xf]
      %v1399 = vld [vmem:[%s1293 + $0x20] sm:$0x1]
      %v1400 = vld [vmem:[%s1293 + $0x24] sm:$0xf]
      %v1401 = vld [vmem:[%s1293 + $0x28] sm:$0xf]
      %v1402 = vld [vmem:[%s1293 + $0x2c] sm:$0x1]
      %v1403 = vld [vmem:[%s1293 + $0x30] sm:$0xf]
      %v1404 = vld [vmem:[%s1293 + $0x34] sm:$0xf]
      %v1405 = vld [vmem:[%s1293 + $0x38] sm:$0x1]
      %v1406 = vld [vmem:[%s1293 + $0x3c] sm:$0xf]
      %v1407 = vld [vmem:[%s1293 + $0x40] sm:$0xf]
      %v1408 = vld [vmem:[%s1293 + $0x44] sm:$0x1]
      %v1409 = vld [vmem:[%s1293 + $0x48] sm:$0xf]
      %v1410 = vld [vmem:[%s1293 + $0x4c] sm:$0xf]
      %v1411 = vld [vmem:[%s1293 + $0x50] sm:$0x1]
      %v1412 = vld [vmem:[%s1293 + $0x54] sm:$0xf]
      %v1413 = vld [vmem:[%s1293 + $0x58] sm:$0xf]
      %v1414 = vld [vmem:[%s1293 + $0x5c] sm:$0x1]
      %v1416 = vshrl.u32 %v1391, 16
      %v1418 = vrot.slane %v1416, 4
      %v1419 = vshll.u32 %v1391, 16
      %v1421 = vrot.slane %v1419, 5
      %v1422 = vor.u32 %v1418, %v1421
      %v1423 = vrot.slane %v1422, 4
      %v1425 = vshll.u32 %v1392, 16
      %v1427 = vrot.slane %v1425, 5
      %v1428 = vsel %vm309, %v1423, %v1427
      %v1429 = vshrl.u32 %v1392, 16
      %v1431 = vrot.slane %v1429, 4
      %v1432 = vor.u32 %v1431, %v1427
      %v1433 = vrot.slane %v1432, 4
      %v1435 = vshll.u32 %v1393, 16
      %v1437 = vrot.slane %v1435, 5
      %v1438 = vsel %vm309, %v1433, %v1437
      %v1440 = vshrl.u32 %v1394, 16
      %v1442 = vrot.slane %v1440, 4
      %v1443 = vshll.u32 %v1394, 16
      %v1445 = vrot.slane %v1443, 5
      %v1446 = vor.u32 %v1442, %v1445
      %v1447 = vrot.slane %v1446, 4
      %v1449 = vshll.u32 %v1395, 16
      %v1451 = vrot.slane %v1449, 5
      %v1452 = vsel %vm309, %v1447, %v1451
      %v1453 = vshrl.u32 %v1395, 16
      %v1455 = vrot.slane %v1453, 4
      %v1456 = vor.u32 %v1455, %v1451
      %v1457 = vrot.slane %v1456, 4
      %v1459 = vshll.u32 %v1396, 16
      %v1461 = vrot.slane %v1459, 5
      %v1462 = vsel %vm309, %v1457, %v1461
      %v1464 = vshrl.u32 %v1397, 16
      %v1466 = vrot.slane %v1464, 4
      %v1467 = vshll.u32 %v1397, 16
      %v1469 = vrot.slane %v1467, 5
      %v1470 = vor.u32 %v1466, %v1469
      %v1471 = vrot.slane %v1470, 4
      %v1473 = vshll.u32 %v1398, 16
      %v1475 = vrot.slane %v1473, 5
      %v1476 = vsel %vm309, %v1471, %v1475
      %v1477 = vshrl.u32 %v1398, 16
      %v1479 = vrot.slane %v1477, 4
      %v1480 = vor.u32 %v1479, %v1475
      %v1481 = vrot.slane %v1480, 4
      %v1483 = vshll.u32 %v1399, 16
      %v1485 = vrot.slane %v1483, 5
      %v1486 = vsel %vm309, %v1481, %v1485
      %v1488 = vshrl.u32 %v1400, 16
      %v1490 = vrot.slane %v1488, 4
      %v1491 = vshll.u32 %v1400, 16
      %v1493 = vrot.slane %v1491, 5
      %v1494 = vor.u32 %v1490, %v1493
      %v1495 = vrot.slane %v1494, 4
      %v1497 = vshll.u32 %v1401, 16
      %v1499 = vrot.slane %v1497, 5
      %v1500 = vsel %vm309, %v1495, %v1499
      %v1501 = vshrl.u32 %v1401, 16
      %v1503 = vrot.slane %v1501, 4
      %v1504 = vor.u32 %v1503, %v1499
      %v1505 = vrot.slane %v1504, 4
      %v1507 = vshll.u32 %v1402, 16
      %v1509 = vrot.slane %v1507, 5
      %v1510 = vsel %vm309, %v1505, %v1509
      %v1512 = vshrl.u32 %v1403, 16
      %v1514 = vrot.slane %v1512, 4
      %v1515 = vshll.u32 %v1403, 16
      %v1517 = vrot.slane %v1515, 5
      %v1518 = vor.u32 %v1514, %v1517
      %v1519 = vrot.slane %v1518, 4
      %v1521 = vshll.u32 %v1404, 16
      %v1523 = vrot.slane %v1521, 5
      %v1524 = vsel %vm309, %v1519, %v1523
      %v1525 = vshrl.u32 %v1404, 16
      %v1527 = vrot.slane %v1525, 4
      %v1528 = vor.u32 %v1527, %v1523
      %v1529 = vrot.slane %v1528, 4
      %v1531 = vshll.u32 %v1405, 16
      %v1533 = vrot.slane %v1531, 5
      %v1534 = vsel %vm309, %v1529, %v1533
      %v1536 = vshrl.u32 %v1406, 16
      %v1538 = vrot.slane %v1536, 4
      %v1539 = vshll.u32 %v1406, 16
      %v1541 = vrot.slane %v1539, 5
      %v1542 = vor.u32 %v1538, %v1541
      %v1543 = vrot.slane %v1542, 4
      %v1545 = vshll.u32 %v1407, 16
      %v1547 = vrot.slane %v1545, 5
      %v1548 = vsel %vm309, %v1543, %v1547
      %v1549 = vshrl.u32 %v1407, 16
      %v1551 = vrot.slane %v1549, 4
      %v1552 = vor.u32 %v1551, %v1547
      %v1553 = vrot.slane %v1552, 4
      %v1555 = vshll.u32 %v1408, 16
      %v1557 = vrot.slane %v1555, 5
      %v1558 = vsel %vm309, %v1553, %v1557
      %v1560 = vshrl.u32 %v1409, 16
      %v1562 = vrot.slane %v1560, 4
      %v1563 = vshll.u32 %v1409, 16
      %v1565 = vrot.slane %v1563, 5
      %v1566 = vor.u32 %v1562, %v1565
      %v1567 = vrot.slane %v1566, 4
      %v1569 = vshll.u32 %v1410, 16
      %v1571 = vrot.slane %v1569, 5
      %v1572 = vsel %vm309, %v1567, %v1571
      %v1573 = vshrl.u32 %v1410, 16
      %v1575 = vrot.slane %v1573, 4
      %v1576 = vor.u32 %v1575, %v1571
      %v1577 = vrot.slane %v1576, 4
      %v1579 = vshll.u32 %v1411, 16
      %v1581 = vrot.slane %v1579, 5
      %v1582 = vsel %vm309, %v1577, %v1581
      %v1584 = vshrl.u32 %v1412, 16
      %v1586 = vrot.slane %v1584, 4
      %v1587 = vshll.u32 %v1412, 16
      %v1589 = vrot.slane %v1587, 5
      %v1590 = vor.u32 %v1586, %v1589
      %v1591 = vrot.slane %v1590, 4
      %v1593 = vshll.u32 %v1413, 16
      %v1595 = vrot.slane %v1593, 5
      %v1596 = vsel %vm309, %v1591, %v1595
      %v1597 = vshrl.u32 %v1413, 16
      %v1599 = vrot.slane %v1597, 4
      %v1600 = vor.u32 %v1599, %v1595
      %v1601 = vrot.slane %v1600, 4
      %v1603 = vshll.u32 %v1414, 16
      %v1605 = vrot.slane %v1603, 5
      %v1606 = vsel %vm309, %v1601, %v1605
      %1607 = vrot.lane.b32.xlu0 %v1428, 28
      %v1608 = vpop.permute.xlu0 %1607
      %1609 = vrot.lane.b32.xlu0 %v1438, 28
      %v1610 = vpop.permute.xlu0 %1609
      %1611 = vrot.lane.b32.xlu0 %v1452, 28
      %v1612 = vpop.permute.xlu0 %1611
      %1613 = vrot.lane.b32.xlu0 %v1462, 28
      %v1614 = vpop.permute.xlu0 %1613
      %1615 = vrot.lane.b32.xlu0 %v1476, 28
      %v1616 = vpop.permute.xlu0 %1615
      %1617 = vrot.lane.b32.xlu0 %v1486, 28
      %v1618 = vpop.permute.xlu0 %1617
      %1619 = vrot.lane.b32.xlu0 %v1500, 28
      %v1620 = vpop.permute.xlu0 %1619
      %1621 = vrot.lane.b32.xlu0 %v1510, 28
      %v1622 = vpop.permute.xlu0 %1621
      %1623 = vrot.lane.b32.xlu0 %v1524, 28
      %v1624 = vpop.permute.xlu0 %1623
      %1625 = vrot.lane.b32.xlu0 %v1534, 28
      %v1626 = vpop.permute.xlu0 %1625
      %1627 = vrot.lane.b32.xlu0 %v1548, 28
      %v1628 = vpop.permute.xlu0 %1627
      %1629 = vrot.lane.b32.xlu0 %v1558, 28
      %v1630 = vpop.permute.xlu0 %1629
      %1631 = vrot.lane.b32.xlu0 %v1572, 28
      %v1632 = vpop.permute.xlu0 %1631
      %1633 = vrot.lane.b32.xlu0 %v1582, 28
      %v1634 = vpop.permute.xlu0 %1633
      %1635 = vrot.lane.b32.xlu0 %v1596, 28
      %v1636 = vpop.permute.xlu0 %1635
      %1637 = vrot.lane.b32.xlu0 %v1606, 28
      %v1638 = vpop.permute.xlu0 %1637
      %vm1655 = vcmask 257248
      %1656 = vst.msk [vmem:[#allocation2] sm:$0xf] %vm1655, %v1608
      %1657 = vst.msk [vmem:[#allocation2 + $0x4] sm:$0xf] %vm1655, %v1610
      %1658 = vst.msk [vmem:[#allocation2 + $0x8] sm:$0xf] %vm1655, %v1612
      %1659 = vst.msk [vmem:[#allocation2 + $0xc] sm:$0xf] %vm1655, %v1614
      %1660 = vst.msk [vmem:[#allocation2 + $0x10] sm:$0xf] %vm1655, %v1616
      %1661 = vst.msk [vmem:[#allocation2 + $0x14] sm:$0xf] %vm1655, %v1618
      %1662 = vst.msk [vmem:[#allocation2 + $0x18] sm:$0xf] %vm1655, %v1620
      %1663 = vst.msk [vmem:[#allocation2 + $0x1c] sm:$0xf] %vm1655, %v1622
      %1664 = vst.msk [vmem:[#allocation2 + $0x20] sm:$0xf] %vm1655, %v1624
      %1665 = vst.msk [vmem:[#allocation2 + $0x24] sm:$0xf] %vm1655, %v1626
      %1666 = vst.msk [vmem:[#allocation2 + $0x28] sm:$0xf] %vm1655, %v1628
      %1667 = vst.msk [vmem:[#allocation2 + $0x2c] sm:$0xf] %vm1655, %v1630
      %1668 = vst.msk [vmem:[#allocation2 + $0x30] sm:$0xf] %vm1655, %v1632
      %1669 = vst.msk [vmem:[#allocation2 + $0x34] sm:$0xf] %vm1655, %v1634
      %1670 = vst.msk [vmem:[#allocation2 + $0x38] sm:$0xf] %vm1655, %v1636
      %1671 = vst.msk [vmem:[#allocation2 + $0x3c] sm:$0xf] %vm1655, %v1638
      %v1672 = vld [vmem:[%s1293] sm:$0xe]
      %v1673 = vld [vmem:[%s1293 + $0x4] sm:$0xf]
      %v1674 = vld [vmem:[%s1293 + $0x8] sm:$0x1]
      %v1675 = vld [vmem:[%s1293 + $0xc] sm:$0xe]
      %v1676 = vld [vmem:[%s1293 + $0x10] sm:$0xf]
      %v1677 = vld [vmem:[%s1293 + $0x14] sm:$0x1]
      %v1678 = vld [vmem:[%s1293 + $0x18] sm:$0xe]
      %v1679 = vld [vmem:[%s1293 + $0x1c] sm:$0xf]
      %v1680 = vld [vmem:[%s1293 + $0x20] sm:$0x1]
      %v1681 = vld [vmem:[%s1293 + $0x24] sm:$0xe]
      %v1682 = vld [vmem:[%s1293 + $0x28] sm:$0xf]
      %v1683 = vld [vmem:[%s1293 + $0x2c] sm:$0x1]
      %v1684 = vld [vmem:[%s1293 + $0x30] sm:$0xe]
      %v1685 = vld [vmem:[%s1293 + $0x34] sm:$0xf]
      %v1686 = vld [vmem:[%s1293 + $0x38] sm:$0x1]
      %v1687 = vld [vmem:[%s1293 + $0x3c] sm:$0xe]
      %v1688 = vld [vmem:[%s1293 + $0x40] sm:$0xf]
      %v1689 = vld [vmem:[%s1293 + $0x44] sm:$0x1]
      %v1690 = vld [vmem:[%s1293 + $0x48] sm:$0xe]
      %v1691 = vld [vmem:[%s1293 + $0x4c] sm:$0xf]
      %v1692 = vld [vmem:[%s1293 + $0x50] sm:$0x1]
      %v1693 = vld [vmem:[%s1293 + $0x54] sm:$0xe]
      %v1694 = vld [vmem:[%s1293 + $0x58] sm:$0xf]
      %v1695 = vld [vmem:[%s1293 + $0x5c] sm:$0x1]
      %v1720 = vrot.slane %v1672, 5
      %v1721 = vrot.slane %v1720, 4
      %v1722 = vrot.slane %v1673, 5
      %v1723 = vsel %vm617, %v1721, %v1722
      %v1724 = vrot.slane %v1722, 4
      %v1725 = vrot.slane %v1674, 5
      %v1726 = vsel %vm617, %v1724, %v1725
      %v1727 = vrot.slane %v1675, 5
      %v1728 = vrot.slane %v1727, 4
      %v1729 = vrot.slane %v1676, 5
      %v1730 = vsel %vm617, %v1728, %v1729
      %v1731 = vrot.slane %v1729, 4
      %v1732 = vrot.slane %v1677, 5
      %v1733 = vsel %vm617, %v1731, %v1732
      %v1734 = vrot.slane %v1678, 5
      %v1735 = vrot.slane %v1734, 4
      %v1736 = vrot.slane %v1679, 5
      %v1737 = vsel %vm617, %v1735, %v1736
      %v1738 = vrot.slane %v1736, 4
      %v1739 = vrot.slane %v1680, 5
      %v1740 = vsel %vm617, %v1738, %v1739
      %v1741 = vrot.slane %v1681, 5
      %v1742 = vrot.slane %v1741, 4
      %v1743 = vrot.slane %v1682, 5
      %v1744 = vsel %vm617, %v1742, %v1743
      %v1745 = vrot.slane %v1743, 4
      %v1746 = vrot.slane %v1683, 5
      %v1747 = vsel %vm617, %v1745, %v1746
      %v1748 = vrot.slane %v1684, 5
      %v1749 = vrot.slane %v1748, 4
      %v1750 = vrot.slane %v1685, 5
      %v1751 = vsel %vm617, %v1749, %v1750
      %v1752 = vrot.slane %v1750, 4
      %v1753 = vrot.slane %v1686, 5
      %v1754 = vsel %vm617, %v1752, %v1753
      %v1755 = vrot.slane %v1687, 5
      %v1756 = vrot.slane %v1755, 4
      %v1757 = vrot.slane %v1688, 5
      %v1758 = vsel %vm617, %v1756, %v1757
      %v1759 = vrot.slane %v1757, 4
      %v1760 = vrot.slane %v1689, 5
      %v1761 = vsel %vm617, %v1759, %v1760
      %v1762 = vrot.slane %v1690, 5
      %v1763 = vrot.slane %v1762, 4
      %v1764 = vrot.slane %v1691, 5
      %v1765 = vsel %vm617, %v1763, %v1764
      %v1766 = vrot.slane %v1764, 4
      %v1767 = vrot.slane %v1692, 5
      %v1768 = vsel %vm617, %v1766, %v1767
      %v1769 = vrot.slane %v1693, 5
      %v1770 = vrot.slane %v1769, 4
      %v1771 = vrot.slane %v1694, 5
      %v1772 = vsel %vm617, %v1770, %v1771
      %v1773 = vrot.slane %v1771, 4
      %v1774 = vrot.slane %v1695, 5
      %v1775 = vsel %vm617, %v1773, %v1774
      %1776 = vrot.lane.b32.xlu0 %v1723, 32
      %v1777 = vpop.permute.xlu0 %1776
      %1778 = vrot.lane.b32.xlu0 %v1726, 32
      %v1779 = vpop.permute.xlu0 %1778
      %1780 = vrot.lane.b32.xlu0 %v1730, 32
      %v1781 = vpop.permute.xlu0 %1780
      %1782 = vrot.lane.b32.xlu0 %v1733, 32
      %v1783 = vpop.permute.xlu0 %1782
      %1784 = vrot.lane.b32.xlu0 %v1737, 32
      %v1785 = vpop.permute.xlu0 %1784
      %1786 = vrot.lane.b32.xlu0 %v1740, 32
      %v1787 = vpop.permute.xlu0 %1786
      %1788 = vrot.lane.b32.xlu0 %v1744, 32
      %v1789 = vpop.permute.xlu0 %1788
      %1790 = vrot.lane.b32.xlu0 %v1747, 32
      %v1791 = vpop.permute.xlu0 %1790
      %1792 = vrot.lane.b32.xlu0 %v1751, 32
      %v1793 = vpop.permute.xlu0 %1792
      %1794 = vrot.lane.b32.xlu0 %v1754, 32
      %v1795 = vpop.permute.xlu0 %1794
      %1796 = vrot.lane.b32.xlu0 %v1758, 32
      %v1797 = vpop.permute.xlu0 %1796
      %1798 = vrot.lane.b32.xlu0 %v1761, 32
      %v1799 = vpop.permute.xlu0 %1798
      %1800 = vrot.lane.b32.xlu0 %v1765, 32
      %v1801 = vpop.permute.xlu0 %1800
      %1802 = vrot.lane.b32.xlu0 %v1768, 32
      %v1803 = vpop.permute.xlu0 %1802
      %1804 = vrot.lane.b32.xlu0 %v1772, 32
      %v1805 = vpop.permute.xlu0 %1804
      %1806 = vrot.lane.b32.xlu0 %v1775, 32
      %v1807 = vpop.permute.xlu0 %1806
      %vm1824 = vcmask 290048
      %1825 = vst.msk [vmem:[#allocation2] sm:$0xf] %vm1824, %v1777
      %1826 = vst.msk [vmem:[#allocation2 + $0x4] sm:$0xf] %vm1824, %v1779
      %1827 = vst.msk [vmem:[#allocation2 + $0x8] sm:$0xf] %vm1824, %v1781
      %1828 = vst.msk [vmem:[#allocation2 + $0xc] sm:$0xf] %vm1824, %v1783
      %1829 = vst.msk [vmem:[#allocation2 + $0x10] sm:$0xf] %vm1824, %v1785
      %1830 = vst.msk [vmem:[#allocation2 + $0x14] sm:$0xf] %vm1824, %v1787
      %1831 = vst.msk [vmem:[#allocation2 + $0x18] sm:$0xf] %vm1824, %v1789
      %1832 = vst.msk [vmem:[#allocation2 + $0x1c] sm:$0xf] %vm1824, %v1791
      %1833 = vst.msk [vmem:[#allocation2 + $0x20] sm:$0xf] %vm1824, %v1793
      %1834 = vst.msk [vmem:[#allocation2 + $0x24] sm:$0xf] %vm1824, %v1795
      %1835 = vst.msk [vmem:[#allocation2 + $0x28] sm:$0xf] %vm1824, %v1797
      %1836 = vst.msk [vmem:[#allocation2 + $0x2c] sm:$0xf] %vm1824, %v1799
      %1837 = vst.msk [vmem:[#allocation2 + $0x30] sm:$0xf] %vm1824, %v1801
      %1838 = vst.msk [vmem:[#allocation2 + $0x34] sm:$0xf] %vm1824, %v1803
      %1839 = vst.msk [vmem:[#allocation2 + $0x38] sm:$0xf] %vm1824, %v1805
      %1840 = vst.msk [vmem:[#allocation2 + $0x3c] sm:$0xf] %vm1824, %v1807
      %v1841 = vld [vmem:[#allocation2] sm:$0xf]
      %v1842 = vld [vmem:[#allocation2 + $0x4] sm:$0xf]
      %v1843 = vld [vmem:[#allocation2 + $0x8] sm:$0xf]
      %v1844 = vld [vmem:[#allocation2 + $0xc] sm:$0xf]
      %v1845 = vld [vmem:[#allocation2 + $0x10] sm:$0xf]
      %v1846 = vld [vmem:[#allocation2 + $0x14] sm:$0xf]
      %v1847 = vld [vmem:[#allocation2 + $0x18] sm:$0xf]
      %v1848 = vld [vmem:[#allocation2 + $0x1c] sm:$0xf]
      %v1849 = vld [vmem:[#allocation2 + $0x20] sm:$0xf]
      %v1850 = vld [vmem:[#allocation2 + $0x24] sm:$0xf]
      %v1851 = vld [vmem:[#allocation2 + $0x28] sm:$0xf]
      %v1852 = vld [vmem:[#allocation2 + $0x2c] sm:$0xf]
      %v1853 = vld [vmem:[#allocation2 + $0x30] sm:$0xf]
      %v1854 = vld [vmem:[#allocation2 + $0x34] sm:$0xf]
      %v1855 = vld [vmem:[#allocation2 + $0x38] sm:$0xf]
      %v1856 = vld [vmem:[#allocation2 + $0x3c] sm:$0xf]
      %v1857 = vld [vmem:[%s1] sm:$0xf]
      %v1858 = vld [vmem:[%s1 + $0x4] sm:$0xf]
      %v1859 = vld [vmem:[%s1 + $0x8] sm:$0xf]
      %v1860 = vld [vmem:[%s1 + $0xc] sm:$0xf]
      %v1861 = vld [vmem:[%s1 + $0x10] sm:$0x3]
      %v1878 = vunpack.c.l.b16 %v1841
      %v1879 = vunpack.c.l.b16 %v1842
      %v1880 = vunpack.c.l.b16 %v1843
      %v1881 = vunpack.c.l.b16 %v1844
      %v1882 = vunpack.c.l.b16 %v1845
      %v1883 = vunpack.c.l.b16 %v1846
      %v1884 = vunpack.c.l.b16 %v1847
      %v1885 = vunpack.c.l.b16 %v1848
      %v1886 = vunpack.c.l.b16 %v1849
      %v1887 = vunpack.c.l.b16 %v1850
      %v1888 = vunpack.c.l.b16 %v1851
      %v1889 = vunpack.c.l.b16 %v1852
      %v1890 = vunpack.c.l.b16 %v1853
      %v1891 = vunpack.c.l.b16 %v1854
      %v1892 = vunpack.c.l.b16 %v1855
      %v1893 = vunpack.c.l.b16 %v1856
      %v1894 = vpack.c.b16 %v1879, %v1878
      %v1895 = vpack.c.b16 %v1881, %v1880
      %v1896 = vpack.c.b16 %v1883, %v1882
      %v1897 = vpack.c.b16 %v1885, %v1884
      %v1898 = vpack.c.b16 %v1887, %v1886
      %v1899 = vpack.c.b16 %v1889, %v1888
      %v1900 = vpack.c.b16 %v1891, %v1890
      %v1901 = vpack.c.b16 %v1893, %v1892
      %v1907 = vunpack.c.l.b16 %v1857
      %v1908 = vunpack.c.l.b16 %v1858
      %v1909 = vunpack.c.l.b16 %v1859
      %v1910 = vunpack.c.l.b16 %v1860
      %v1911 = vunpack.c.l.b16 %v1861
      %v1912 = vpack.c.b16 %v1908, %v1907
      %v1913 = vpack.c.b16 %v1910, %v1909
      %v1914 = vpack.c.b16 %v1911, %v1911
      %vm1917 = vcmask 293888
      %v1919 = vsel %vm1917, %v1894, 0
      %v1922 = vsel %vm1917, %v1895, 0
      %v1925 = vsel %vm1917, %v1896, 0
      %v1928 = vsel %vm1917, %v1897, 0
      %v1931 = vsel %vm1917, %v1898, 0
      %v1934 = vsel %vm1917, %v1899, 0
      %v1937 = vsel %vm1917, %v1900, 0
      %v1940 = vsel %vm1917, %v1901, 0
      %vm1942 = vcmask 1041408
      %v1944 = vsel %vm1942, %v1914, 0
      %1946 = vmatprep.subr.bf16.mxu0 0
      %1947 = vmatpush1.bf16.msra.mxu0 0
      %1948 = vmatprep.subr.bf16.mxu0 0
      %1949 = vmatpush1.bf16.msra.mxu0 0
      %1950 = vmatprep.subr.bf16.mxu0 0
      %1951 = vmatpush1.bf16.msra.mxu0 0
      %1952 = vmatprep.subr.bf16.mxu0 0
      %1953 = vmatpush1.bf16.msra.mxu0 0
      %1954 = vmatprep.subr.bf16.mxu0 0
      %1955 = vmatpush1.bf16.msra.mxu0 0
      %1956 = vmatprep.subr.bf16.mxu0 0
      %1957 = vmatpush1.bf16.msra.mxu0 %v1944
      %1958 = vmatprep.subr.bf16.mxu0 0
      %1959 = vmatpush1.bf16.msra.mxu0 %v1913
      %1960 = vmatprep.subr.bf16.mxu0 0
      %1961 = vmatpush1.bf16.msra.mxu0 %v1912
      %1962 = vmatprep.subr.bf16.mxu0 0
      %1963 = vmatpush2.bf16.msra.mxu0 0
      %1964 = vmatprep.subr.bf16.mxu0 0
      %1965 = vmatpush2.bf16.msra.mxu0 0
      %1966 = vmatprep.subr.bf16.mxu0 0
      %1967 = vmatpush2.bf16.msra.mxu0 0
      %1968 = vmatprep.subr.bf16.mxu0 0
      %1969 = vmatpush2.bf16.msra.mxu0 0
      %1970 = vmatprep.subr.bf16.mxu0 0
      %1971 = vmatpush2.bf16.msra.mxu0 0
      %1972 = vmatprep.subr.bf16.mxu0 0
      %1973 = vmatpush2.bf16.msra.mxu0 0
      %1974 = vmatprep.subr.bf16.mxu0 0
      %1975 = vmatpush2.bf16.msra.mxu0 0
      %1976 = vmatprep.subr.bf16.mxu0 0
      %1977 = vmatpush2.bf16.msra.mxu0 0
      %1978 = vmatprep.mubr.bf16.mxu0 0
      %1979 = vmatmul.mubr.bf16.gmra.mxu0 %v1919
      %v1980 = vpop.f32.mrf.mxu0
      %v1981 = vadd.f32 0.0, %v1980
      %v1982 = vpop.f32.mrf.mxu0
      %v1983 = vpop.f32.mrf.mxu0
      %v1984 = vadd.f32 0.0, %v1983
      %v1985 = vpop.f32.mrf.mxu0
      %1986 = vmatprep.mubr.bf16.mxu0 0
      %1987 = vmatmul.mubr.bf16.gmra.mxu0 %v1922
      %v1988 = vpop.f32.mrf.mxu0
      %v1989 = vadd.f32 0.0, %v1988
      %v1990 = vpop.f32.mrf.mxu0
      %v1991 = vpop.f32.mrf.mxu0
      %v1992 = vadd.f32 0.0, %v1991
      %v1993 = vpop.f32.mrf.mxu0
      %1994 = vmatprep.mubr.bf16.mxu0 0
      %1995 = vmatmul.mubr.bf16.gmra.mxu0 %v1925
      %v1996 = vpop.f32.mrf.mxu0
      %v1997 = vadd.f32 0.0, %v1996
      %v1998 = vpop.f32.mrf.mxu0
      %v1999 = vpop.f32.mrf.mxu0
      %v2000 = vadd.f32 0.0, %v1999
      %v2001 = vpop.f32.mrf.mxu0
      %2002 = vmatprep.mubr.bf16.mxu0 0
      %2003 = vmatmul.mubr.bf16.gmra.mxu0 %v1928
      %v2004 = vpop.f32.mrf.mxu0
      %v2005 = vadd.f32 0.0, %v2004
      %v2006 = vpop.f32.mrf.mxu0
      %v2007 = vpop.f32.mrf.mxu0
      %v2008 = vadd.f32 0.0, %v2007
      %v2009 = vpop.f32.mrf.mxu0
      %2010 = vmatprep.mubr.bf16.mxu0 0
      %2011 = vmatmul.mubr.bf16.gmra.mxu0 %v1931
      %v2012 = vpop.f32.mrf.mxu0
      %v2013 = vadd.f32 0.0, %v2012
      %v2014 = vpop.f32.mrf.mxu0
      %v2015 = vpop.f32.mrf.mxu0
      %v2016 = vadd.f32 0.0, %v2015
      %v2017 = vpop.f32.mrf.mxu0
      %2018 = vmatprep.mubr.bf16.mxu0 0
      %2019 = vmatmul.mubr.bf16.gmra.mxu0 %v1934
      %v2020 = vpop.f32.mrf.mxu0
      %v2021 = vadd.f32 0.0, %v2020
      %v2022 = vpop.f32.mrf.mxu0
      %v2023 = vpop.f32.mrf.mxu0
      %v2024 = vadd.f32 0.0, %v2023
      %v2025 = vpop.f32.mrf.mxu0
      %2026 = vmatprep.mubr.bf16.mxu0 0
      %2027 = vmatmul.mubr.bf16.gmra.mxu0 %v1937
      %v2028 = vpop.f32.mrf.mxu0
      %v2029 = vadd.f32 0.0, %v2028
      %v2030 = vpop.f32.mrf.mxu0
      %v2031 = vpop.f32.mrf.mxu0
      %v2032 = vadd.f32 0.0, %v2031
      %v2033 = vpop.f32.mrf.mxu0
      %2034 = vmatprep.mubr.bf16.mxu0 0
      %2035 = vmatmul.mubr.bf16.gmra.mxu0 %v1940
      %v2036 = vpop.f32.mrf.mxu0
      %v2037 = vadd.f32 0.0, %v2036
      %v2038 = vpop.f32.mrf.mxu0
      %v2039 = vpop.f32.mrf.mxu0
      %v2040 = vadd.f32 0.0, %v2039
      %v2041 = vpop.f32.mrf.mxu0
      %2042 = vdwg.mxu0
      // Predicated region
      $region41: #{conv_bn_relu.1} parent=35 // pred_check
        %p2043 = pneg %p234
      $region42: #{conv_bn_relu.1} parent=35 // pred_check_branch
        %2045 = sbr.rel (%p2043) target = $region44
      $region43: #{conv_bn_relu.1} parent=35 // pred_region
        %v2046 = vld [vmem:[#allocation3] sm:$0x1]
        %vm2047 = vcmask 64512
        %v2048 = vsel %vm2047, %v1981, 0.0
        %v2049 = vsel %vm2047, %v1984, 0.0
        %v2050 = vadd.f32 %v2048, %v2049
        %v2051 = vsel %vm2047, %v1989, 0.0
        %v2052 = vadd.f32 %v2050, %v2051
        %v2053 = vsel %vm2047, %v1992, 0.0
        %v2054 = vadd.f32 %v2052, %v2053
        %v2055 = vsel %vm2047, %v1997, 0.0
        %v2056 = vadd.f32 %v2054, %v2055
        %v2057 = vsel %vm2047, %v2000, 0.0
        %v2058 = vadd.f32 %v2056, %v2057
        %v2059 = vsel %vm2047, %v2005, 0.0
        %v2060 = vadd.f32 %v2058, %v2059
        %v2061 = vsel %vm2047, %v2008, 0.0
        %v2062 = vadd.f32 %v2060, %v2061
        %v2063 = vsel %vm2047, %v2013, 0.0
        %v2064 = vadd.f32 %v2062, %v2063
        %v2065 = vsel %vm2047, %v2016, 0.0
        %v2066 = vadd.f32 %v2064, %v2065
        %v2067 = vsel %vm2047, %v2021, 0.0
        %v2068 = vadd.f32 %v2066, %v2067
        %v2069 = vsel %vm2047, %v2024, 0.0
        %v2070 = vadd.f32 %v2068, %v2069
        %v2071 = vsel %vm2047, %v2029, 0.0
        %v2072 = vadd.f32 %v2070, %v2071
        %v2073 = vsel %vm2047, %v2032, 0.0
        %v2074 = vadd.f32 %v2072, %v2073
        %v2075 = vsel %vm2047, %v2037, 0.0
        %v2076 = vadd.f32 %v2074, %v2075
        %v2077 = vsel %vm2047, %v2040, 0.0
        %v2078 = vadd.f32 %v2076, %v2077
        %v2079 = vrot.slane %v2078, 4
        %v2080 = vadd.f32 %v2078, %v2079
        %v2081 = vrot.slane %v2080, 2
        %v2082 = vadd.f32 %v2080, %v2081
        %v2083 = vrot.slane %v2082, 1
        %v2084 = vadd.f32 %v2082, %v2083
        %v2085 = vadd.f32 %v2046, %v2084
        %vm2086 = vcmask 57344
        %2087 = vst.msk [vmem:[#allocation3] sm:$0x1] %vm2086, %v2085
        %v2088 = vld [vmem:[#allocation4] sm:$0x1]
        %v2089 = vmul.f32 %v1981, %v1981
        %v2090 = vmul.f32 %v1984, %v1984
        %v2091 = vmul.f32 %v1989, %v1989
        %v2092 = vmul.f32 %v1992, %v1992
        %v2093 = vmul.f32 %v1997, %v1997
        %v2094 = vmul.f32 %v2000, %v2000
        %v2095 = vmul.f32 %v2005, %v2005
        %v2096 = vmul.f32 %v2008, %v2008
        %v2097 = vmul.f32 %v2013, %v2013
        %v2098 = vmul.f32 %v2016, %v2016
        %v2099 = vmul.f32 %v2021, %v2021
        %v2100 = vmul.f32 %v2024, %v2024
        %v2101 = vmul.f32 %v2029, %v2029
        %v2102 = vmul.f32 %v2032, %v2032
        %v2103 = vmul.f32 %v2037, %v2037
        %v2104 = vmul.f32 %v2040, %v2040
        %v2105 = vsel %vm2047, %v2089, 0.0
        %v2106 = vsel %vm2047, %v2090, 0.0
        %v2107 = vadd.f32 %v2105, %v2106
        %v2108 = vsel %vm2047, %v2091, 0.0
        %v2109 = vadd.f32 %v2107, %v2108
        %v2110 = vsel %vm2047, %v2092, 0.0
        %v2111 = vadd.f32 %v2109, %v2110
        %v2112 = vsel %vm2047, %v2093, 0.0
        %v2113 = vadd.f32 %v2111, %v2112
        %v2114 = vsel %vm2047, %v2094, 0.0
        %v2115 = vadd.f32 %v2113, %v2114
        %v2116 = vsel %vm2047, %v2095, 0.0
        %v2117 = vadd.f32 %v2115, %v2116
        %v2118 = vsel %vm2047, %v2096, 0.0
        %v2119 = vadd.f32 %v2117, %v2118
        %v2120 = vsel %vm2047, %v2097, 0.0
        %v2121 = vadd.f32 %v2119, %v2120
        %v2122 = vsel %vm2047, %v2098, 0.0
        %v2123 = vadd.f32 %v2121, %v2122
        %v2124 = vsel %vm2047, %v2099, 0.0
        %v2125 = vadd.f32 %v2123, %v2124
        %v2126 = vsel %vm2047, %v2100, 0.0
        %v2127 = vadd.f32 %v2125, %v2126
        %v2128 = vsel %vm2047, %v2101, 0.0
        %v2129 = vadd.f32 %v2127, %v2128
        %v2130 = vsel %vm2047, %v2102, 0.0
        %v2131 = vadd.f32 %v2129, %v2130
        %v2132 = vsel %vm2047, %v2103, 0.0
        %v2133 = vadd.f32 %v2131, %v2132
        %v2134 = vsel %vm2047, %v2104, 0.0
        %v2135 = vadd.f32 %v2133, %v2134
        %v2136 = vrot.slane %v2135, 4
        %v2137 = vadd.f32 %v2135, %v2136
        %v2138 = vrot.slane %v2137, 2
        %v2139 = vadd.f32 %v2137, %v2138
        %v2140 = vrot.slane %v2139, 1
        %v2141 = vadd.f32 %v2139, %v2140
        %v2142 = vadd.f32 %v2088, %v2141
        %2143 = vst.msk [vmem:[#allocation4] sm:$0x1] %vm2086, %v2142
      $region44: #{conv_bn_relu.1} parent=35 // pred_fallthru
        _
      %p2144 = scmp.eq.s32.totalorder %s20, 1
      // Predicated region
      $region45: #{conv_bn_relu.1} parent=35 // pred_check
        %p2145 = pneg %p2144
      $region46: #{conv_bn_relu.1} parent=35 // pred_check_branch
        %2147 = sbr.rel (%p2145) target = $region48
      $region47: #{conv_bn_relu.1} parent=35 // pred_region
        %v2148 = vld [vmem:[#allocation3] sm:$0x1]
        %v2149 = vmul.f32 %v2148, 0.001953125
        %v2150 = vld [vmem:[#allocation4] sm:$0x1]
        %v2151 = vmul.f32 %v2150, 0.001953125
        %v2152 = vmul.f32 %v2149, %v2149
        %v2153 = vsub.f32 %v2151, %v2152
        %v2154 = vld [vmem:[%s2] sm:$0x1]
        %v2155 = vadd.f32 %v2153, 1e-05
        %v2156 = vrsqrt.pop %v2155
        %v2157 = vmul.f32 %v2154, %v2156
        %v2158 = vld [vmem:[%s3] sm:$0x1]
        %v2159 = vmul.f32 %v2149, %v2157
        %v2160 = vsub.f32 %v2158, %v2159
        %v2162 = vlaneseq
        %v2163 = vshrl.u32 %v2162, 7
        %v2164 = vsub.s32 0, %v2163
        %v2165 = vrot.slane %v2157, %v2164
        %v2167 = vmul.f32 %v1981, %v2165
        %v2168 = vmul.f32 %v1984, %v2165
        %v2169 = vmul.f32 %v1989, %v2165
        %v2170 = vmul.f32 %v1992, %v2165
        %v2171 = vmul.f32 %v1997, %v2165
        %v2172 = vmul.f32 %v2000, %v2165
        %v2173 = vmul.f32 %v2005, %v2165
        %v2174 = vmul.f32 %v2008, %v2165
        %v2175 = vmul.f32 %v2013, %v2165
        %v2176 = vmul.f32 %v2016, %v2165
        %v2177 = vmul.f32 %v2021, %v2165
        %v2178 = vmul.f32 %v2024, %v2165
        %v2179 = vmul.f32 %v2029, %v2165
        %v2180 = vmul.f32 %v2032, %v2165
        %v2181 = vmul.f32 %v2037, %v2165
        %v2182 = vmul.f32 %v2040, %v2165
        %v2184 = vlaneseq
        %v2185 = vshrl.u32 %v2184, 7
        %v2186 = vsub.s32 0, %v2185
        %v2187 = vrot.slane %v2160, %v2186
        %v2189 = vadd.f32 %v2167, %v2187
        %v2190 = vadd.f32 %v2168, %v2187
        %v2191 = vadd.f32 %v2169, %v2187
        %v2192 = vadd.f32 %v2170, %v2187
        %v2193 = vadd.f32 %v2171, %v2187
        %v2194 = vadd.f32 %v2172, %v2187
        %v2195 = vadd.f32 %v2173, %v2187
        %v2196 = vadd.f32 %v2174, %v2187
        %v2197 = vadd.f32 %v2175, %v2187
        %v2198 = vadd.f32 %v2176, %v2187
        %v2199 = vadd.f32 %v2177, %v2187
        %v2200 = vadd.f32 %v2178, %v2187
        %v2201 = vadd.f32 %v2179, %v2187
        %v2202 = vadd.f32 %v2180, %v2187
        %v2203 = vadd.f32 %v2181, %v2187
        %v2204 = vadd.f32 %v2182, %v2187
        %v2205 = vmax.f32 %v2189, 0.0
        %v2206 = vmax.f32 %v2190, 0.0
        %v2207 = vmax.f32 %v2191, 0.0
        %v2208 = vmax.f32 %v2192, 0.0
        %v2209 = vmax.f32 %v2193, 0.0
        %v2210 = vmax.f32 %v2194, 0.0
        %v2211 = vmax.f32 %v2195, 0.0
        %v2212 = vmax.f32 %v2196, 0.0
        %v2213 = vmax.f32 %v2197, 0.0
        %v2214 = vmax.f32 %v2198, 0.0
        %v2215 = vmax.f32 %v2199, 0.0
        %v2216 = vmax.f32 %v2200, 0.0
        %v2217 = vmax.f32 %v2201, 0.0
        %v2218 = vmax.f32 %v2202, 0.0
        %v2219 = vmax.f32 %v2203, 0.0
        %v2220 = vmax.f32 %v2204, 0.0
        %vm2221 = vcmask 64512
        %2222 = vst.msk [vmem:[%s228] sm:$0xff] %vm2221, %v2205
        %2223 = vst.msk [vmem:[%s228 + $0x8] sm:$0xff] %vm2221, %v2206
        %2224 = vst.msk [vmem:[%s228 + $0x10] sm:$0xff] %vm2221, %v2207
        %2225 = vst.msk [vmem:[%s228 + $0x18] sm:$0xff] %vm2221, %v2208
        %2226 = vst.msk [vmem:[%s228 + $0x20] sm:$0xff] %vm2221, %v2209
        %2227 = vst.msk [vmem:[%s228 + $0x28] sm:$0xff] %vm2221, %v2210
        %2228 = vst.msk [vmem:[%s228 + $0x30] sm:$0xff] %vm2221, %v2211
        %2229 = vst.msk [vmem:[%s228 + $0x38] sm:$0xff] %vm2221, %v2212
        %2230 = vst.msk [vmem:[%s228 + $0x40] sm:$0xff] %vm2221, %v2213
        %2231 = vst.msk [vmem:[%s228 + $0x48] sm:$0xff] %vm2221, %v2214
        %2232 = vst.msk [vmem:[%s228 + $0x50] sm:$0xff] %vm2221, %v2215
        %2233 = vst.msk [vmem:[%s228 + $0x58] sm:$0xff] %vm2221, %v2216
        %2234 = vst.msk [vmem:[%s228 + $0x60] sm:$0xff] %vm2221, %v2217
        %2235 = vst.msk [vmem:[%s228 + $0x68] sm:$0xff] %vm2221, %v2218
        %2236 = vst.msk [vmem:[%s228 + $0x70] sm:$0xff] %vm2221, %v2219
        %2237 = vst.msk [vmem:[%s228 + $0x78] sm:$0xff] %vm2221, %v2220
      $region48: #{conv_bn_relu.1} parent=35 // pred_fallthru
        _
      %s2238 = smul.u32 %s21, 2
      %s2239 = sadd.s32 %s2238, %s22
      %s2240 = smul.u32 %s2239, %s20
      %s2241 = smul.u32 16, %s2240
      %p2242 = scmp.lt.s32.totalorder %s2241, 63
      %s2243 = scalar_select %p2242, %s2241, 63
      %s2244 = smul.addr %s2243, 8
      %s2245 = scalar_lea.vmem %s4, %s2244
      // Predicated region
      $region49: #{conv_bn_relu.1} parent=35 // pred_check
        %p2246 = pneg %p147
      $region50: #{conv_bn_relu.1} parent=35 // pred_check_branch
        %2248 = sbr.rel (%p2246) target = $region52
      $region51: #{conv_bn_relu.1} parent=35 // pred_region
        %s2249 = smul.u32 %s21, 2
        %s2250 = sadd.s32 %s2249, %s22
        %s2251 = smul.u32 %s2250, %s20
        %s2252 = smul.u32 16, %s2251
      $region52: #{conv_bn_relu.1} parent=35 // pred_fallthru
        _
    $region36: #{conv_bn_relu.1} parent=5 // pred_fallthru
      _
    %p2253 = scmp.le.s32.totalorder 2, %s10
    // Predicated region
    $region53: #{conv_bn_relu.1} parent=5 // pred_check
      %p2254 = pneg %p2253
    $region54: #{conv_bn_relu.1} parent=5 // pred_check_branch
      %2256 = sbr.rel (%p2254) target = $region56
    $region55: #{conv_bn_relu.1} parent=5 // pred_region
      %s2257 = ssub.s32 %s10, 2
      // Predicated region
      $region57: #{conv_bn_relu.1} parent=55 // pred_check
        %p2258 = pneg %p153
      $region58: #{conv_bn_relu.1} parent=55 // pred_check_branch
        %2260 = sbr.rel (%p2258) target = $region60
      $region59: #{conv_bn_relu.1} parent=55 // pred_region
        %s2261 = smul.u32 %s24, 2
        %s2262 = sadd.s32 %s2261, %s25
        %s2263 = smul.u32 %s2262, %s23
        %s2264 = smul.u32 16, %s2263
        %p2265 = scmp.lt.s32.totalorder %s2264, 63
        %s2266 = scalar_select %p2265, %s2264, 63
        %s2267 = smul.addr %s2266, 8
        %s2268 = scalar_lea.vmem %s4, %s2267
      $region60: #{conv_bn_relu.1} parent=55 // pred_fallthru
        _
    $region56: #{conv_bn_relu.1} parent=5 // pred_fallthru
      _
  $region6: #{conv_bn_relu.1} parent=0 // loop_footer
    %s14 = sadd.s32 1, %s10
  $region7: #{conv_bn_relu.1} parent=0 // loop_footer_branch
    %9 = sbr.rel target = $region3
  $region8: #{conv_bn_relu.1} parent=0 // loop_exit
    _

</llo_original>
